<compile_context>
chip_gen: v7x
topology: tpu7x:2x2x1
jax: 0.10.0
libtpu: 0.0.40
codegen_flags: <defaults>
</compile_context>

<pallas_src>
import math

import jax
import jax.numpy as jnp
from jax.experimental import pallas as pl
from jax.experimental.pallas import tpu as pltpu

# ---- network configuration (mirrors network_conf / __init__ args) ----
NET_DEPTH = 4           # network_conf['net_depth']
NET_WIDTH = 32          # network_conf['net_width']
SKIP = True             # network_conf['skip']
SKIP_LAYERS = (1,)      # network_conf['skip_layers']
INPUT_CH = 4
OUTPUT_CH = 3
NEG_SLOPE = 0.01        # nn.LeakyReLU default negative_slope


def _leaky_relu(x):
    # One VALU max instead of compare+select; identical to LeakyReLU for 0 < slope < 1.
    return jnp.maximum(x, NEG_SLOPE * x)


def _round_up(v, m):
    return ((v + m - 1) // m) * m


def _pick_tile(n, tm):
    """Lane-aligned batch tile, capped at 8192 (v5e default scoped-VMEM stays fine)
    and clamped so small N still produces >= 2 grid steps (v7x megacore occupancy)."""
    tm = max(128, min(int(tm), 8192))
    tm = min(tm, _round_up((n + 1) // 2, 128))
    return _round_up(tm, 128)


def _make_kernel(net_depth, net_width, skip_layers):
    """Kernel args (all VMEM tiles):
      x_ref  : (in_ch, TM)            input tile, batch on lanes
      wi_ref : (W*(1+n_skip), in_ch)  transposed layer-0 weight + x-part of skip layers
      wh_ref : (W*(D-1), W)           transposed h-part of layers 1..D-1
      wo_ref : (out_ch, W)            transposed output weight
      bh_ref : (D*W, 1)               hidden biases stacked per layer (f32)
      bo_ref : (out_ch, 1)            output bias (f32)
      o_ref  : (out_ch, TM)           output tile, batch on lanes
    """
    W = net_width
    sl = tuple(skip_layers)

    def kernel(x_ref, wi_ref, wh_ref, wo_ref, bh_ref, bo_ref, o_ref):
        cd = wi_ref.dtype                              # matmul operand dtype (bf16/f32)

        def dot(a, b):
            return jnp.dot(a, b, preferred_element_type=jnp.float32)

        # All x-projections (layer 0 + every skip layer) in a single K=in_ch dot.
        xi = dot(wi_ref[...], x_ref[...].astype(cd))    # (W*(1+n_skip), TM) f32

        # layer 0
        h = _leaky_relu(xi[0:W, :] + bh_ref[0:W, :])
        skip_slot = 1
        for i in range(1, net_depth):
            z = dot(wh_ref[(i - 1) * W:i * W, :], h.astype(cd))
            if (i - 1) in sl:
                # cat([input_pts, h], -1) @ W2  ==  W2_h @ h + W2_x @ x  (no concat)
                z = z + xi[skip_slot * W:(skip_slot + 1) * W, :]
                skip_slot += 1
            h = _leaky_relu(z + bh_ref[i * W:(i + 1) * W, :])
        out = dot(wo_ref[...], h.astype(cd)) + bo_ref[...]
        o_ref[...] = out.astype(o_ref.dtype)

    return kernel


def make_params(key, input_ch=INPUT_CH, output_ch=OUTPUT_CH,
                net_depth=NET_DEPTH, net_width=NET_WIDTH,
                skip=SKIP, skip_layers=SKIP_LAYERS):
    """Params matching nn.Linear default init (uniform +-1/sqrt(fan_in)).

    Weights are (in_features, out_features) so the reference computes x @ W + b.
    Skip-receiving layers keep the concatenated in_dim (input_ch first, then h),
    exactly like the PyTorch module; the wrapper splits/transposes them.
    """
    sl = tuple(skip_layers) if (skip and skip_layers is not None) else ()
    params = []
    in_dim = input_ch
    for i in range(net_depth):
        if i > 0 and (i - 1) in sl:
            in_dim = net_width + input_ch
        stdv = 1.0 / math.sqrt(in_dim)
        key, kw, kb = jax.random.split(key, 3)
        w = jax.random.uniform(kw, (in_dim, net_width), jnp.float32, -stdv, stdv)
        b = jax.random.uniform(kb, (1, net_width), jnp.float32, -stdv, stdv)
        params.append((w, b))
        in_dim = net_width
    stdv = 1.0 / math.sqrt(net_width)
    key, kw, kb = jax.random.split(key, 3)
    w = jax.random.uniform(kw, (net_width, output_ch), jnp.float32, -stdv, stdv)
    b = jax.random.uniform(kb, (1, output_ch), jnp.float32, -stdv, stdv)
    params.append((w, b))
    return params


def three_dim_network_t(x_t, params, *, net_depth=NET_DEPTH, net_width=NET_WIDTH,
                        skip=SKIP, skip_layers=SKIP_LAYERS, tm=2048,
                        matmul_dtype=jnp.bfloat16):
    """Transposed entry point: x_t (in_ch, Np) -> (out_ch, Np), with Np % tm == 0.

    Models that already keep points in the lane-dense (features, N) layout should
    call this directly and skip the pad/transpose HBM round trips of
    three_dim_network().
    """
    in_ch, np_total = x_t.shape
    out_ch = params[-1][0].shape[1]
    W = net_width
    sl = tuple(skip_layers) if (skip and skip_layers is not None) else ()
    assert net_depth >= 2, "kernel assumes at least two pts_linears layers"
    assert (net_depth - 1) not in sl, (
        "skip on the last pts layer would feed a concat into output_linear")
    # TODO(synk): support skip on the last pts layer by splitting wo like wi.
    assert tm % 128 == 0 and np_total % tm == 0, (tm, np_total)

    # ---- pack / pre-transpose parameters (done once, outside the kernel) ----
    w0, b0 = params[0]
    wi_blocks = [w0.T]                                   # (W, in_ch)
    wh_blocks = []                                       # (W, W) per layer 1..D-1
    bh_blocks = [b0.reshape(W, 1)]
    for i in range(1, net_depth):
        w, b = params[i]
        if (i - 1) in sl:
            wi_blocks.append(w[:in_ch, :].T)             # x-part of the skip layer
            wh_blocks.append(w[in_ch:, :].T)             # h-part of the skip layer
        else:
            wh_blocks.append(w.T)
        bh_blocks.append(b.reshape(W, 1))
    wi = jnp.concatenate(wi_blocks, 0).astype(matmul_dtype)   # (W*(1+n_skip), in_ch)
    wh = jnp.concatenate(wh_blocks, 0).astype(matmul_dtype)   # (W*(D-1), W)
    bh = jnp.concatenate(bh_blocks, 0)                         # (D*W, 1)  f32
    wo, bo = params[-1]
    wo_t = wo.T.astype(matmul_dtype)                           # (out_ch, W)
    bo_t = bo.reshape(out_ch, 1)                               # (out_ch, 1) f32

    grid = (np_total // tm,)

    # advisory cost estimate for XLA scheduling around the custom call
    flops_pt = 2 * in_ch * wi.shape[0] + (net_depth - 1) * 2 * W * W + 2 * W * out_ch
    cost = pl.CostEstimate(
        flops=flops_pt * np_total,
        transcendentals=0,
        bytes_accessed=np_total * (in_ch + out_ch) * x_t.dtype.itemsize
        + wi.size * wi.dtype.itemsize + wh.size * wh.dtype.itemsize
        + wo_t.size * wo_t.dtype.itemsize + 4 * (bh.size + bo_t.size))

    kernel = _make_kernel(net_depth, net_width, sl)

    return pl.pallas_call(
        kernel,
        out_shape=jax.ShapeDtypeStruct((out_ch, np_total), x_t.dtype),
        grid=grid,
        in_specs=[
            pl.BlockSpec((in_ch, tm), lambda i: (0, i)),   # batch-on-lanes input tile
            # Weights/biases: full blocks, constant index_map -> DMA'd once and kept
            # VMEM-resident; default double-buffering of the x/out tiles is enough
            # since the kernel is MXU-bound, not DMA-exposed.
            pl.BlockSpec(wi.shape, lambda i: (0, 0)),
            pl.BlockSpec(wh.shape, lambda i: (0, 0)),
            pl.BlockSpec(wo_t.shape, lambda i: (0, 0)),
            pl.BlockSpec(bh.shape, lambda i: (0, 0)),
            pl.BlockSpec(bo_t.shape, lambda i: (0, 0)),
        ],
        out_specs=pl.BlockSpec((out_ch, tm), lambda i: (0, i)),
        compiler_params=pltpu.CompilerParams(dimension_semantics=("parallel",)),
        cost_estimate=cost,
    )(x_t, wi, wh, wo_t, bh, bo_t)


def three_dim_network(x, params, *, net_depth=NET_DEPTH, net_width=NET_WIDTH,
                      skip=SKIP, skip_layers=SKIP_LAYERS, tm=2048,
                      matmul_dtype=jnp.bfloat16):
    """Forward pass matching ThreeDimNetwork.forward. x: (N, in_ch) -> (N, out_ch)."""
    N, _ = x.shape
    tm = _pick_tile(N, tm)
    n_pad = (-N) % tm
    # Pad to a tile multiple and present the lane-dense (features, N) layout.
    # TODO(synk): callers that can carry (features, N) activations should call
    # three_dim_network_t directly and skip these two extra HBM passes/launches.
    x_t = jnp.pad(x, ((0, n_pad), (0, 0))).T
    out_t = three_dim_network_t(x_t, params, net_depth=net_depth,
                                net_width=net_width, skip=skip,
                                skip_layers=skip_layers, tm=tm,
                                matmul_dtype=matmul_dtype)
    return out_t[:, :N].T                               # back to (N, out_ch)


def three_dim_network_ref(x, params, *, net_depth=NET_DEPTH, skip=SKIP,
                          skip_layers=SKIP_LAYERS):
    """Pure-JAX reference reproducing the PyTorch forward exactly."""
    sl = tuple(skip_layers) if (skip and skip_layers is not None) else ()
    inp = x
    h = inp
    for i in range(net_depth):
        w, b = params[i]
        h = _leaky_relu(jnp.dot(h, w, precision=jax.lax.Precision.HIGHEST) + b)
        if i in sl:
            h = jnp.concatenate([inp, h], axis=-1)
    w, b = params[net_depth]
    return jnp.dot(h, w, precision=jax.lax.Precision.HIGHEST) + b


if __name__ == "__main__":
    key = jax.random.PRNGKey(0)
    k_x, k_p = jax.random.split(key)

    N = 1000  # exercises the N % tm != 0 padding path and the small-N tile clamp
    x = jax.random.normal(k_x, (N, INPUT_CH), jnp.float32)
    params = make_params(k_p)

    ref = three_dim_network_ref(x, params)

    # f32-matmul path: tight correctness check.
    out_f32 = jax.block_until_ready(
        three_dim_network(x, params, matmul_dtype=jnp.float32))
    assert out_f32.shape == (N, OUTPUT_CH)
    assert jnp.allclose(out_f32, ref, atol=2e-4, rtol=2e-4), (
        f"f32 path max abs err {jnp.max(jnp.abs(out_f32 - ref))}")

    # bf16-matmul path (default, MXU-native on v5e/v6e/v7x): relaxed tolerance,
    # documented per review (bf16 operands, f32 accumulation).
    out_bf16 = jax.block_until_ready(three_dim_network(x, params))
    assert out_bf16.shape == (N, OUTPUT_CH)
    assert jnp.allclose(out_bf16, ref, atol=5e-2, rtol=5e-2), (
        f"bf16 path max abs err {jnp.max(jnp.abs(out_bf16 - ref))}")

    print("KERNEL_OK")
</pallas_src>

<mosaic_0001>
module attributes {stable_mosaic.version = 11 : i64} {
  func.func @kernel(%arg0: i32, %arg1: memref<4x512xf32, #tpu.memory_space<vmem>>, %arg2: memref<64x4xf32, #tpu.memory_space<vmem>>, %arg3: memref<96x32xf32, #tpu.memory_space<vmem>>, %arg4: memref<3x32xf32, #tpu.memory_space<vmem>>, %arg5: memref<128x1xf32, #tpu.memory_space<vmem>>, %arg6: memref<3x1xf32, #tpu.memory_space<vmem>>, %arg7: memref<3x512xf32, #tpu.memory_space<vmem>>) attributes {dimension_semantics = [#tpu.dimension_semantics<parallel>], iteration_bounds = array<i64: 2>, scalar_prefetch = 0 : i64, scratch_operands = 0 : i64, tpu.core_type = #tpu.core_type<tc>, window_params = [{transform_indices = @transform_0, window_bounds = array<i64: 4, 512>}, {pipeline_mode = #tpu.pipeline_mode<synchronous>, transform_indices = @transform_1, window_bounds = array<i64: 64, 4>}, {pipeline_mode = #tpu.pipeline_mode<synchronous>, transform_indices = @transform_2, window_bounds = array<i64: 96, 32>}, {pipeline_mode = #tpu.pipeline_mode<synchronous>, transform_indices = @transform_3, window_bounds = array<i64: 3, 32>}, {pipeline_mode = #tpu.pipeline_mode<synchronous>, transform_indices = @transform_4, window_bounds = array<i64: 128, 1>}, {pipeline_mode = #tpu.pipeline_mode<synchronous>, transform_indices = @transform_5, window_bounds = array<i64: 3, 1>}, {transform_indices = @transform_6, window_bounds = array<i64: 3, 512>}]} {
    %c0 = arith.constant 0 : index
    %c0_0 = arith.constant 0 : index
    %0 = vector.load %arg2[%c0, %c0_0] : memref<64x4xf32, #tpu.memory_space<vmem>>, vector<64x4xf32>
    %c0_1 = arith.constant 0 : index
    %c0_2 = arith.constant 0 : index
    %1 = vector.load %arg1[%c0_1, %c0_2] : memref<4x512xf32, #tpu.memory_space<vmem>>, vector<4x512xf32>
    %cst = arith.constant dense<0.000000e+00> : vector<64x512xf32>
    %2 = tpu.matmul %0, %1, %cst {dimension_numbers = #tpu.dot_dimension_numbers<[1], [0], [0], [1], [0, 0, 1, 1], [], []>} : vector<64x4xf32>, vector<4x512xf32>, vector<64x512xf32> -> vector<64x512xf32>
    %3 = vector.extract_strided_slice %2 {offsets = [0, 0], sizes = [32, 512], strides = [1, 1]} : vector<64x512xf32> to vector<32x512xf32>
    %c0_3 = arith.constant 0 : index
    %c0_4 = arith.constant 0 : index
    %4 = vector.load %arg5[%c0_3, %c0_4] : memref<128x1xf32, #tpu.memory_space<vmem>>, vector<32x1xf32>
    %5 = vector.broadcast %4 : vector<32x1xf32> to vector<32x512xf32>
    %6 = arith.addf %3, %5 : vector<32x512xf32>
    %cst_5 = arith.constant 0.00999999977 : f32
    %7 = vector.broadcast %cst_5 : f32 to vector<32x512xf32>
    %8 = arith.mulf %7, %6 : vector<32x512xf32>
    %9 = arith.maximumf %6, %8 : vector<32x512xf32>
    %c0_6 = arith.constant 0 : index
    %c0_7 = arith.constant 0 : index
    %10 = vector.load %arg3[%c0_6, %c0_7] : memref<96x32xf32, #tpu.memory_space<vmem>>, vector<32x32xf32>
    %cst_8 = arith.constant dense<0.000000e+00> : vector<32x512xf32>
    %11 = tpu.matmul %10, %9, %cst_8 {dimension_numbers = #tpu.dot_dimension_numbers<[1], [0], [0], [1], [0, 0, 1, 1], [], []>} : vector<32x32xf32>, vector<32x512xf32>, vector<32x512xf32> -> vector<32x512xf32>
    %c32 = arith.constant 32 : index
    %c0_9 = arith.constant 0 : index
    %12 = vector.load %arg5[%c32, %c0_9] : memref<128x1xf32, #tpu.memory_space<vmem>>, vector<32x1xf32>
    %13 = vector.broadcast %12 : vector<32x1xf32> to vector<32x512xf32>
    %14 = arith.addf %11, %13 : vector<32x512xf32>
    %cst_10 = arith.constant 0.00999999977 : f32
    %15 = vector.broadcast %cst_10 : f32 to vector<32x512xf32>
    %16 = arith.mulf %15, %14 : vector<32x512xf32>
    %17 = arith.maximumf %14, %16 : vector<32x512xf32>
    %c32_11 = arith.constant 32 : index
    %c0_12 = arith.constant 0 : index
    %18 = vector.load %arg3[%c32_11, %c0_12] : memref<96x32xf32, #tpu.memory_space<vmem>>, vector<32x32xf32>
    %cst_13 = arith.constant dense<0.000000e+00> : vector<32x512xf32>
    %19 = tpu.matmul %18, %17, %cst_13 {dimension_numbers = #tpu.dot_dimension_numbers<[1], [0], [0], [1], [0, 0, 1, 1], [], []>} : vector<32x32xf32>, vector<32x512xf32>, vector<32x512xf32> -> vector<32x512xf32>
    %20 = vector.extract_strided_slice %2 {offsets = [32, 0], sizes = [32, 512], strides = [1, 1]} : vector<64x512xf32> to vector<32x512xf32>
    %21 = arith.addf %19, %20 : vector<32x512xf32>
    %c64 = arith.constant 64 : index
    %c0_14 = arith.constant 0 : index
    %22 = vector.load %arg5[%c64, %c0_14] : memref<128x1xf32, #tpu.memory_space<vmem>>, vector<32x1xf32>
    %23 = vector.broadcast %22 : vector<32x1xf32> to vector<32x512xf32>
    %24 = arith.addf %21, %23 : vector<32x512xf32>
    %cst_15 = arith.constant 0.00999999977 : f32
    %25 = vector.broadcast %cst_15 : f32 to vector<32x512xf32>
    %26 = arith.mulf %25, %24 : vector<32x512xf32>
    %27 = arith.maximumf %24, %26 : vector<32x512xf32>
    %c64_16 = arith.constant 64 : index
    %c0_17 = arith.constant 0 : index
    %28 = vector.load %arg3[%c64_16, %c0_17] : memref<96x32xf32, #tpu.memory_space<vmem>>, vector<32x32xf32>
    %cst_18 = arith.constant dense<0.000000e+00> : vector<32x512xf32>
    %29 = tpu.matmul %28, %27, %cst_18 {dimension_numbers = #tpu.dot_dimension_numbers<[1], [0], [0], [1], [0, 0, 1, 1], [], []>} : vector<32x32xf32>, vector<32x512xf32>, vector<32x512xf32> -> vector<32x512xf32>
    %c96 = arith.constant 96 : index
    %c0_19 = arith.constant 0 : index
    %30 = vector.load %arg5[%c96, %c0_19] : memref<128x1xf32, #tpu.memory_space<vmem>>, vector<32x1xf32>
    %31 = vector.broadcast %30 : vector<32x1xf32> to vector<32x512xf32>
    %32 = arith.addf %29, %31 : vector<32x512xf32>
    %cst_20 = arith.constant 0.00999999977 : f32
    %33 = vector.broadcast %cst_20 : f32 to vector<32x512xf32>
    %34 = arith.mulf %33, %32 : vector<32x512xf32>
    %35 = arith.maximumf %32, %34 : vector<32x512xf32>
    %c0_21 = arith.constant 0 : index
    %c0_22 = arith.constant 0 : index
    %36 = vector.load %arg4[%c0_21, %c0_22] : memref<3x32xf32, #tpu.memory_space<vmem>>, vector<3x32xf32>
    %cst_23 = arith.constant dense<0.000000e+00> : vector<3x512xf32>
    %37 = tpu.matmul %36, %35, %cst_23 {dimension_numbers = #tpu.dot_dimension_numbers<[1], [0], [0], [1], [0, 0, 1, 1], [], []>} : vector<3x32xf32>, vector<32x512xf32>, vector<3x512xf32> -> vector<3x512xf32>
    %c0_24 = arith.constant 0 : index
    %c0_25 = arith.constant 0 : index
    %38 = vector.load %arg6[%c0_24, %c0_25] : memref<3x1xf32, #tpu.memory_space<vmem>>, vector<3x1xf32>
    %39 = vector.broadcast %38 : vector<3x1xf32> to vector<3x512xf32>
    %40 = arith.addf %37, %39 : vector<3x512xf32>
    %c0_26 = arith.constant 0 : index
    %c0_27 = arith.constant 0 : index
    %41 = vector.load %arg7[%c0_26, %c0_27] : memref<3x512xf32, #tpu.memory_space<vmem>>, vector<3x512xf32>
    tpu.vector_store %arg7[%c0_26, %c0_27], %40 {strides = array<i32>} : memref<3x512xf32, #tpu.memory_space<vmem>>, vector<3x512xf32>,
    return
  }
  func.func @transform_0(%arg0: i32) -> (i32, i32) {
    %c0_i32 = arith.constant 0 : i32
    %c0_i32_0 = arith.constant 0 : i32
    return %c0_i32, %arg0 : i32, i32
  }
  func.func @transform_1(%arg0: i32) -> (i32, i32) {
    %c0_i32 = arith.constant 0 : i32
    %c0_i32_0 = arith.constant 0 : i32
    %c0_i32_1 = arith.constant 0 : i32
    return %c0_i32, %c0_i32_0 : i32, i32
  }
  func.func @transform_2(%arg0: i32) -> (i32, i32) {
    %c0_i32 = arith.constant 0 : i32
    %c0_i32_0 = arith.constant 0 : i32
    %c0_i32_1 = arith.constant 0 : i32
    return %c0_i32, %c0_i32_0 : i32, i32
  }
  func.func @transform_3(%arg0: i32) -> (i32, i32) {
    %c0_i32 = arith.constant 0 : i32
    %c0_i32_0 = arith.constant 0 : i32
    %c0_i32_1 = arith.constant 0 : i32
    return %c0_i32, %c0_i32_0 : i32, i32
  }
  func.func @transform_4(%arg0: i32) -> (i32, i32) {
    %c0_i32 = arith.constant 0 : i32
    %c0_i32_0 = arith.constant 0 : i32
    %c0_i32_1 = arith.constant 0 : i32
    return %c0_i32, %c0_i32_0 : i32, i32
  }
  func.func @transform_5(%arg0: i32) -> (i32, i32) {
    %c0_i32 = arith.constant 0 : i32
    %c0_i32_0 = arith.constant 0 : i32
    %c0_i32_1 = arith.constant 0 : i32
    return %c0_i32, %c0_i32_0 : i32, i32
  }
  func.func @transform_6(%arg0: i32) -> (i32, i32) {
    %c0_i32 = arith.constant 0 : i32
    %c0_i32_0 = arith.constant 0 : i32
    return %c0_i32, %arg0 : i32, i32
  }
}

</mosaic_0001>

<llo_original>
// kernel: tpu_custom_call.1
$region0: #{tpu_custom_call.1}
  #allocation0 [shape = 'u32[]', space=smem, size = 0x4, offset = 0x4, fixed_abs, tag = 'smem constant byte address 0x4 - core index']
  #allocation1 [shape = 'u32[144,128]{1,0:T(1,128)}', space=vmem, size = 0x12000, scoped, tag = 'internal scratch']
  %s0 = inlined_call_operand.vmem [shape: f32[4,1024], index: 0, kind: input, shape index: {}]
  %s1 = inlined_call_operand.vmem [shape: f32[64,4], index: 1, kind: input, shape index: {}]
  %s2 = inlined_call_operand.vmem [shape: f32[96,32], index: 2, kind: input, shape index: {}]
  %s3 = inlined_call_operand.vmem [shape: f32[3,32], index: 3, kind: input, shape index: {}]
  %s4 = inlined_call_operand.vmem [shape: f32[128,1], index: 4, kind: input, shape index: {}]
  %s5 = inlined_call_operand.vmem [shape: f32[3,1], index: 5, kind: input, shape index: {}]
  %s6 = inlined_call_operand.hbm [shape: f32[3,1024], index: 6, kind: output, shape index: {}]
  %s7 = sld [smem:[#allocation0]]
  $region57: #{tpu_custom_call.1} parent=0
    _
  %s9 = ssub.s32 1, %s7
  %s10 = scalar_select 0, %s9, %s7
  $region1: #{tpu_custom_call.1} parent=0
    #allocation2 [shape = 'u8[16384]{0}', space=vmem, size = 0x4000, scoped, tag = 'output window, operand 0']
    #allocation3 [shape = 's32[2]{0}', space=sflag, size = 0x8, scoped, tag = 'scoped memory for tpu_custom_call.1']
    %11 = vsyncpa [#allocation3], 0
    %s12 = scalar_lea.sflag [#allocation3], 1
    %13 = vsyncpa %s12, 0
    loop: start=0, step=1, limit=4
    $region2: #{tpu_custom_call.1} parent=1 // loop_pre_header
      _
    $region3: #{tpu_custom_call.1} parent=1 // loop_header
      %s15 = sphi 0, %s19
      %p16 = scmp.ge.s32.totalorder %s15, 4
      %s25 = sphi 0, %s27
      %s28 = sphi 0, %s25
      %s29 = sphi 0, %s28
      %s45 = sphi 0, %s29
      %s49 = sphi 0, %s49
      %s51 = sphi 0, %s49
      %s52 = sphi 0, %s51
      %s66 = sphi 0, %s52
      %s70 = sphi 0, %s70
      %s72 = sphi 0, %s70
      %s73 = sphi 0, %s72
      %s87 = sphi 0, %s73
      %s91 = sphi 0, %s91
      %s93 = sphi 0, %s91
      %s94 = sphi 0, %s93
      %s108 = sphi 0, %s94
      %s112 = sphi 0, %s112
      %s114 = sphi 0, %s112
      %s115 = sphi 0, %s114
      %s129 = sphi 0, %s115
      %s133 = sphi 0, %s133
      %s135 = sphi 0, %s133
      %s136 = sphi 0, %s135
      %s150 = sphi 0, %s136
      %s156 = sphi 0, %s158
      %s159 = sphi 0, %s156
      %s160 = sphi 0, %s159
      %s176 = sphi 0, %s160
    $region4: #{tpu_custom_call.1} parent=1 // loop_header_branch
      %18 = sbr.rel (%p16) target = $region8
    $region5: #{tpu_custom_call.1} parent=1 // loop_body
      %s20 = ssub.s32 %s15, 1
      %s21 = ssub.s32 %s15, 2
      %s22 = sadd.s32 %s15, 1
      %s23 = ssub.s32 %s15, %s22
      %p24 = scmp.eq.s32.totalorder %s23, 0
      %s26 = sadd.s32 %s25, 1
      %s27 = scalar_select %p24, %s25, %s26
      %p30 = pneg %p24
      %p31 = scmp.eq.s32.totalorder %s15, 1
      %p32 = por %p30, %p31
      %p33 = scmp.ne.s32.totalorder %s25, %s28
      %p34 = scmp.eq.s32.totalorder %s15, 0
      %p35 = por %p33, %p34
      %p36 = scmp.ne.s32.totalorder %s25, %s28
      %p37 = scmp.eq.s32.totalorder %s20, 1
      %p38 = por %p36, %p37
      %p39 = scmp.ne.s32.totalorder %s28, %s29
      %p40 = scmp.eq.s32.totalorder %s20, 0
      %p41 = por %p39, %p40
      %p42 = scmp.ne.s32.totalorder %s28, %s29
      %p43 = scmp.eq.s32.totalorder %s21, 1
      %p44 = por %p42, %p43
      %p46 = scmp.ne.s32.totalorder %s29, %s45
      %p47 = scmp.eq.s32.totalorder %s21, 0
      %p48 = por %p46, %p47
      %s50 = sadd.s32 %s49, 1
      %p53 = scmp.eq.s32.totalorder %s15, 1
      %p54 = scmp.ne.s32.totalorder %s49, %s51
      %p55 = scmp.eq.s32.totalorder %s15, 0
      %p56 = por %p54, %p55
      %p57 = scmp.ne.s32.totalorder %s49, %s51
      %p58 = scmp.eq.s32.totalorder %s20, 1
      %p59 = por %p57, %p58
      %p60 = scmp.ne.s32.totalorder %s51, %s52
      %p61 = scmp.eq.s32.totalorder %s20, 0
      %p62 = por %p60, %p61
      %p63 = scmp.ne.s32.totalorder %s51, %s52
      %p64 = scmp.eq.s32.totalorder %s21, 1
      %p65 = por %p63, %p64
      %p67 = scmp.ne.s32.totalorder %s52, %s66
      %p68 = scmp.eq.s32.totalorder %s21, 0
      %p69 = por %p67, %p68
      %s71 = sadd.s32 %s70, 1
      %p74 = scmp.eq.s32.totalorder %s15, 1
      %p75 = scmp.ne.s32.totalorder %s70, %s72
      %p76 = scmp.eq.s32.totalorder %s15, 0
      %p77 = por %p75, %p76
      %p78 = scmp.ne.s32.totalorder %s70, %s72
      %p79 = scmp.eq.s32.totalorder %s20, 1
      %p80 = por %p78, %p79
      %p81 = scmp.ne.s32.totalorder %s72, %s73
      %p82 = scmp.eq.s32.totalorder %s20, 0
      %p83 = por %p81, %p82
      %p84 = scmp.ne.s32.totalorder %s72, %s73
      %p85 = scmp.eq.s32.totalorder %s21, 1
      %p86 = por %p84, %p85
      %p88 = scmp.ne.s32.totalorder %s73, %s87
      %p89 = scmp.eq.s32.totalorder %s21, 0
      %p90 = por %p88, %p89
      %s92 = sadd.s32 %s91, 1
      %p95 = scmp.eq.s32.totalorder %s15, 1
      %p96 = scmp.ne.s32.totalorder %s91, %s93
      %p97 = scmp.eq.s32.totalorder %s15, 0
      %p98 = por %p96, %p97
      %p99 = scmp.ne.s32.totalorder %s91, %s93
      %p100 = scmp.eq.s32.totalorder %s20, 1
      %p101 = por %p99, %p100
      %p102 = scmp.ne.s32.totalorder %s93, %s94
      %p103 = scmp.eq.s32.totalorder %s20, 0
      %p104 = por %p102, %p103
      %p105 = scmp.ne.s32.totalorder %s93, %s94
      %p106 = scmp.eq.s32.totalorder %s21, 1
      %p107 = por %p105, %p106
      %p109 = scmp.ne.s32.totalorder %s94, %s108
      %p110 = scmp.eq.s32.totalorder %s21, 0
      %p111 = por %p109, %p110
      %s113 = sadd.s32 %s112, 1
      %p116 = scmp.eq.s32.totalorder %s15, 1
      %p117 = scmp.ne.s32.totalorder %s112, %s114
      %p118 = scmp.eq.s32.totalorder %s15, 0
      %p119 = por %p117, %p118
      %p120 = scmp.ne.s32.totalorder %s112, %s114
      %p121 = scmp.eq.s32.totalorder %s20, 1
      %p122 = por %p120, %p121
      %p123 = scmp.ne.s32.totalorder %s114, %s115
      %p124 = scmp.eq.s32.totalorder %s20, 0
      %p125 = por %p123, %p124
      %p126 = scmp.ne.s32.totalorder %s114, %s115
      %p127 = scmp.eq.s32.totalorder %s21, 1
      %p128 = por %p126, %p127
      %p130 = scmp.ne.s32.totalorder %s115, %s129
      %p131 = scmp.eq.s32.totalorder %s21, 0
      %p132 = por %p130, %p131
      %s134 = sadd.s32 %s133, 1
      %p137 = scmp.eq.s32.totalorder %s15, 1
      %p138 = scmp.ne.s32.totalorder %s133, %s135
      %p139 = scmp.eq.s32.totalorder %s15, 0
      %p140 = por %p138, %p139
      %p141 = scmp.ne.s32.totalorder %s133, %s135
      %p142 = scmp.eq.s32.totalorder %s20, 1
      %p143 = por %p141, %p142
      %p144 = scmp.ne.s32.totalorder %s135, %s136
      %p145 = scmp.eq.s32.totalorder %s20, 0
      %p146 = por %p144, %p145
      %p147 = scmp.ne.s32.totalorder %s135, %s136
      %p148 = scmp.eq.s32.totalorder %s21, 1
      %p149 = por %p147, %p148
      %p151 = scmp.ne.s32.totalorder %s136, %s150
      %p152 = scmp.eq.s32.totalorder %s21, 0
      %p153 = por %p151, %p152
      %s154 = ssub.s32 %s15, %s22
      %p155 = scmp.eq.s32.totalorder %s154, 0
      %s157 = sadd.s32 %s156, 1
      %s158 = scalar_select %p155, %s156, %s157
      %p161 = pneg %p155
      %p162 = scmp.eq.s32.totalorder %s15, 1
      %p163 = por %p161, %p162
      %p164 = scmp.ne.s32.totalorder %s156, %s159
      %p165 = scmp.eq.s32.totalorder %s15, 0
      %p166 = por %p164, %p165
      %p167 = scmp.ne.s32.totalorder %s156, %s159
      %p168 = scmp.eq.s32.totalorder %s20, 1
      %p169 = por %p167, %p168
      %p170 = scmp.ne.s32.totalorder %s159, %s160
      %p171 = scmp.eq.s32.totalorder %s20, 0
      %p172 = por %p170, %p171
      %p173 = scmp.ne.s32.totalorder %s159, %s160
      %p174 = scmp.eq.s32.totalorder %s21, 1
      %p175 = por %p173, %p174
      %p177 = scmp.ne.s32.totalorder %s160, %s176
      %p178 = scmp.eq.s32.totalorder %s21, 0
      %p179 = por %p177, %p178
      %p180 = scmp.le.s32.totalorder 1, %s15
      %p181 = scmp.lt.s32.totalorder %s15, 3
      %p182 = pnand %p180, %p181
      %p183 = pneg %p182
      // Predicated region
      $region9: #{tpu_custom_call.1} parent=5 // pred_check
        _
      $region10: #{tpu_custom_call.1} parent=5 // pred_check_branch
        %185 = sbr.rel (%p182) target = $region12
      $region11: #{tpu_custom_call.1} parent=5 // pred_region
        %s186 = ssub.s32 %s15, 1
        // Predicated region
        $region13: #{tpu_custom_call.1} parent=11 // pred_check
          %p187 = pneg %p62
        $region14: #{tpu_custom_call.1} parent=11 // pred_check_branch
          %189 = sbr.rel (%p187) target = $region16
        $region15: #{tpu_custom_call.1} parent=11 // pred_region
          _
        $region16: #{tpu_custom_call.1} parent=11 // pred_fallthru
          _
        // Predicated region
        $region17: #{tpu_custom_call.1} parent=11 // pred_check
          %p190 = pneg %p83
        $region18: #{tpu_custom_call.1} parent=11 // pred_check_branch
          %192 = sbr.rel (%p190) target = $region20
        $region19: #{tpu_custom_call.1} parent=11 // pred_region
          _
        $region20: #{tpu_custom_call.1} parent=11 // pred_fallthru
          _
        // Predicated region
        $region21: #{tpu_custom_call.1} parent=11 // pred_check
          %p193 = pneg %p104
        $region22: #{tpu_custom_call.1} parent=11 // pred_check_branch
          %195 = sbr.rel (%p193) target = $region24
        $region23: #{tpu_custom_call.1} parent=11 // pred_region
          _
        $region24: #{tpu_custom_call.1} parent=11 // pred_fallthru
          _
        // Predicated region
        $region25: #{tpu_custom_call.1} parent=11 // pred_check
          %p196 = pneg %p125
        $region26: #{tpu_custom_call.1} parent=11 // pred_check_branch
          %198 = sbr.rel (%p196) target = $region28
        $region27: #{tpu_custom_call.1} parent=11 // pred_region
          _
        $region28: #{tpu_custom_call.1} parent=11 // pred_fallthru
          _
        // Predicated region
        $region29: #{tpu_custom_call.1} parent=11 // pred_check
          %p199 = pneg %p146
        $region30: #{tpu_custom_call.1} parent=11 // pred_check_branch
          %201 = sbr.rel (%p199) target = $region32
        $region31: #{tpu_custom_call.1} parent=11 // pred_region
          _
        $region32: #{tpu_custom_call.1} parent=11 // pred_fallthru
          _
      $region12: #{tpu_custom_call.1} parent=5 // pred_fallthru
        _
      %p202 = scmp.lt.s32.totalorder %s15, 2
      // Predicated region
      $region33: #{tpu_custom_call.1} parent=5 // pred_check
        %p203 = pneg %p202
      $region34: #{tpu_custom_call.1} parent=5 // pred_check_branch
        %205 = sbr.rel (%p203) target = $region36
      $region35: #{tpu_custom_call.1} parent=5 // pred_region
        // Predicated region
        $region37: #{tpu_custom_call.1} parent=35 // pred_check
          %p206 = pneg %p35
        $region38: #{tpu_custom_call.1} parent=35 // pred_check_branch
          %208 = sbr.rel (%p206) target = $region40
        $region39: #{tpu_custom_call.1} parent=35 // pred_region
          %s209 = smul.u32 4, %s15
          %p210 = scmp.lt.s32.totalorder %s209, 7
          %s211 = scalar_select %p210, %s209, 7
          %s212 = smul.addr %s211, 4
          %s213 = scalar_lea.vmem %s0, %s212
          %s214 = smul.u32 4, %s15
        $region40: #{tpu_custom_call.1} parent=35 // pred_fallthru
          _
      $region36: #{tpu_custom_call.1} parent=5 // pred_fallthru
        _
      %p215 = scmp.le.s32.totalorder 1, %s15
      %p216 = scmp.lt.s32.totalorder %s15, 3
      %p217 = pnand %p215, %p216
      %p218 = pneg %p217
      // Predicated region
      $region41: #{tpu_custom_call.1} parent=5 // pred_check
        _
      $region42: #{tpu_custom_call.1} parent=5 // pred_check_branch
        %220 = sbr.rel (%p217) target = $region44
      $region43: #{tpu_custom_call.1} parent=5 // pred_region
        %s221 = ssub.s32 %s15, 1
        %s222 = smul.u32 4, %s20
        %p223 = scmp.lt.s32.totalorder %s222, 7
        %s224 = scalar_select %p223, %s222, 7
        %s225 = smul.addr %s224, 4
        %s226 = scalar_lea.vmem %s0, %s225
        %p227 = pneg %p41
        %p228 = pneg %p38
        %p229 = pneg %p62
        %p230 = pneg %p59
        %p231 = pneg %p83
        %p232 = pneg %p80
        %p233 = pneg %p104
        %p234 = pneg %p101
        %p235 = pneg %p125
        %p236 = pneg %p122
        %p237 = pneg %p146
        %p238 = pneg %p143
        %p239 = pneg %p172
        %p240 = pneg %p169
        %s241 = sand.u32 %s159, 1
        %s242 = scalar_lea.sflag [#allocation3], %s241
        %s243 = sand.u32 %s159, 1
        %s244 = smul.addr %s243, 16
        %s245 = scalar_lea.vmem [#allocation2], %s244
        %s246 = smul.u32 4, %s20
        %p247 = scmp.lt.s32.totalorder %s246, 7
        %s248 = scalar_select %p247, %s246, 7
        %s249 = smul.addr %s248, 4
        %s250 = scalar_lea.vmem %s0, %s249
        %s251 = smul.u32 4, %s20
        %s252 = smul.u32 4, %s20
        %v253 = vld [vmem:[%s1] sm:$0xff]
        %v254 = vld [vmem:[%s1 + $0x8] sm:$0xff]
        %v255 = vld [vmem:[%s1 + $0x10] sm:$0xff]
        %v256 = vld [vmem:[%s1 + $0x18] sm:$0xff]
        %v257 = vld [vmem:[%s1 + $0x20] sm:$0xff]
        %v258 = vld [vmem:[%s1 + $0x28] sm:$0xff]
        %v259 = vld [vmem:[%s1 + $0x30] sm:$0xff]
        %v260 = vld [vmem:[%s1 + $0x38] sm:$0xff]
        %v261 = vld [vmem:[%s250] sm:$0xff]
        %v262 = vld [vmem:[%s250 + $0x8] sm:$0xff]
        %v265 = vcombine.high %v261, %v261
        %v266 = vcombine.high %v262, %v262
        %vm267 = vcmask 31744
        %v269 = vsel %vm267, %v253, 0
        %v272 = vsel %vm267, %v254, 0
        %v275 = vsel %vm267, %v255, 0
        %v278 = vsel %vm267, %v256, 0
        %v281 = vsel %vm267, %v257, 0
        %v284 = vsel %vm267, %v258, 0
        %v287 = vsel %vm267, %v259, 0
        %v290 = vsel %vm267, %v260, 0
        %vm292 = vcmask 1043456
        %v293 = vsel %vm292, %v261, 0
        %v295 = vsel %vm292, %v265, 0
        %v297 = vsel %vm292, %v262, 0
        %v299 = vsel %vm292, %v266, 0
        %301 = vmatprep.subr.mxu0 %v295
        %302 = vmatpush1.msra.mxu0 %v293
        %303 = vmatprep.subr.mxu0 0.0
        %304 = vmatpush1.msra.mxu0 0.0
        %305 = vmatprep.subr.mxu0 0.0
        %306 = vmatpush1.msra.mxu0 0.0
        %307 = vmatprep.subr.mxu0 0.0
        %308 = vmatpush1.msra.mxu0 0.0
        %309 = vmatprep.subr.mxu0 0.0
        %310 = vmatpush1.msra.mxu0 0.0
        %311 = vmatprep.subr.mxu0 0.0
        %312 = vmatpush1.msra.mxu0 0.0
        %313 = vmatprep.subr.mxu0 0.0
        %314 = vmatpush1.msra.mxu0 0.0
        %315 = vmatprep.subr.mxu0 0.0
        %316 = vmatpush1.msra.mxu0 0.0
        %317 = vmatprep.subr.mxu0 0.0
        %318 = vmatpush1.msra.mxu0 0.0
        %319 = vmatprep.subr.mxu0 0.0
        %320 = vmatpush1.msra.mxu0 0.0
        %321 = vmatprep.subr.mxu0 0.0
        %322 = vmatpush1.msra.mxu0 0.0
        %323 = vmatprep.subr.mxu0 0.0
        %324 = vmatpush1.msra.mxu0 0.0
        %325 = vmatprep.subr.mxu0 0.0
        %326 = vmatpush1.msra.mxu0 0.0
        %327 = vmatprep.subr.mxu0 0.0
        %328 = vmatpush1.msra.mxu0 0.0
        %329 = vmatprep.subr.mxu0 0.0
        %330 = vmatpush1.msra.mxu0 0.0
        %331 = vmatprep.subr.mxu0 0.0
        %332 = vmatpush1.msra.mxu0 0.0
        %333 = vmatprep.subr.mxu0 0.0
        %334 = vmatpush1.msra.mxu0 0.0
        %335 = vmatprep.subr.mxu0 0.0
        %336 = vmatpush1.msra.mxu0 0.0
        %337 = vmatprep.subr.mxu0 0.0
        %338 = vmatpush1.msra.mxu0 0.0
        %339 = vmatprep.subr.mxu0 0.0
        %340 = vmatpush1.msra.mxu0 0.0
        %341 = vmatprep.subr.mxu0 0.0
        %342 = vmatpush1.msra.mxu0 0.0
        %343 = vmatprep.subr.mxu0 0.0
        %344 = vmatpush1.msra.mxu0 0.0
        %345 = vmatprep.subr.mxu0 0.0
        %346 = vmatpush1.msra.mxu0 0.0
        %347 = vmatprep.subr.mxu0 0.0
        %348 = vmatpush1.msra.mxu0 0.0
        %349 = vmatprep.subr.mxu0 0.0
        %350 = vmatpush1.msra.mxu0 0.0
        %351 = vmatprep.subr.mxu0 0.0
        %352 = vmatpush1.msra.mxu0 0.0
        %353 = vmatprep.subr.mxu0 0.0
        %354 = vmatpush1.msra.mxu0 0.0
        %355 = vmatprep.subr.mxu0 0.0
        %356 = vmatpush1.msra.mxu0 0.0
        %357 = vmatprep.subr.mxu0 0.0
        %358 = vmatpush1.msra.mxu0 0.0
        %359 = vmatprep.subr.mxu0 0.0
        %360 = vmatpush1.msra.mxu0 0.0
        %361 = vmatprep.subr.mxu0 0.0
        %362 = vmatpush1.msra.mxu0 0.0
        %363 = vmatprep.subr.mxu0 0.0
        %364 = vmatpush1.msra.mxu0 0.0
        %365 = vmatprep.mubr.f32.mxu0 0.0
        %366 = vmatmul.mubr.f32.gmra.mrb[0].mxu0 %v269
        %v367 = vpop.f32.mrb[0].mxu0
        %v368 = vadd.f32 0.0, %v367
        %v369 = vpop.f32.mrb[0].mxu0
        %v370 = vadd.f32 0.0, %v369
        %371 = vmatprep.mubr.f32.mxu0 0.0
        %372 = vmatmul.mubr.f32.gmra.mrb[0].mxu0 %v272
        %v373 = vpop.f32.mrb[0].mxu0
        %v374 = vadd.f32 0.0, %v373
        %v375 = vpop.f32.mrb[0].mxu0
        %v376 = vadd.f32 0.0, %v375
        %377 = vmatprep.mubr.f32.mxu0 0.0
        %378 = vmatmul.mubr.f32.gmra.mrb[0].mxu0 %v275
        %v379 = vpop.f32.mrb[0].mxu0
        %v380 = vadd.f32 0.0, %v379
        %v381 = vpop.f32.mrb[0].mxu0
        %v382 = vadd.f32 0.0, %v381
        %383 = vmatprep.mubr.f32.mxu0 0.0
        %384 = vmatmul.mubr.f32.gmra.mrb[0].mxu0 %v278
        %v385 = vpop.f32.mrb[0].mxu0
        %v386 = vadd.f32 0.0, %v385
        %v387 = vpop.f32.mrb[0].mxu0
        %v388 = vadd.f32 0.0, %v387
        %389 = vmatprep.mubr.f32.mxu0 0.0
        %390 = vmatmul.mubr.f32.gmra.mrb[0].mxu0 %v281
        %v391 = vpop.f32.mrb[0].mxu0
        %v392 = vadd.f32 0.0, %v391
        %v393 = vpop.f32.mrb[0].mxu0
        %v394 = vadd.f32 0.0, %v393
        %395 = vmatprep.mubr.f32.mxu0 0.0
        %396 = vmatmul.mubr.f32.gmra.mrb[0].mxu0 %v284
        %v397 = vpop.f32.mrb[0].mxu0
        %v398 = vadd.f32 0.0, %v397
        %v399 = vpop.f32.mrb[0].mxu0
        %v400 = vadd.f32 0.0, %v399
        %401 = vmatprep.mubr.f32.mxu0 0.0
        %402 = vmatmul.mubr.f32.gmra.mrb[0].mxu0 %v287
        %v403 = vpop.f32.mrb[0].mxu0
        %v404 = vadd.f32 0.0, %v403
        %v405 = vpop.f32.mrb[0].mxu0
        %v406 = vadd.f32 0.0, %v405
        %407 = vmatprep.mubr.f32.mxu0 0.0
        %408 = vmatmul.mubr.f32.gmra.mrb[0].mxu0 %v290
        %v409 = vpop.f32.mrb[0].mxu0
        %v410 = vadd.f32 0.0, %v409
        %v411 = vpop.f32.mrb[0].mxu0
        %v412 = vadd.f32 0.0, %v411
        %413 = vdwg.mxu0
        %414 = vmatprep.subr.mxu0 %v299
        %415 = vmatpush1.msra.mxu0 %v297
        %416 = vmatprep.subr.mxu0 0.0
        %417 = vmatpush1.msra.mxu0 0.0
        %418 = vmatprep.subr.mxu0 0.0
        %419 = vmatpush1.msra.mxu0 0.0
        %420 = vmatprep.subr.mxu0 0.0
        %421 = vmatpush1.msra.mxu0 0.0
        %422 = vmatprep.subr.mxu0 0.0
        %423 = vmatpush1.msra.mxu0 0.0
        %424 = vmatprep.subr.mxu0 0.0
        %425 = vmatpush1.msra.mxu0 0.0
        %426 = vmatprep.subr.mxu0 0.0
        %427 = vmatpush1.msra.mxu0 0.0
        %428 = vmatprep.subr.mxu0 0.0
        %429 = vmatpush1.msra.mxu0 0.0
        %430 = vmatprep.subr.mxu0 0.0
        %431 = vmatpush1.msra.mxu0 0.0
        %432 = vmatprep.subr.mxu0 0.0
        %433 = vmatpush1.msra.mxu0 0.0
        %434 = vmatprep.subr.mxu0 0.0
        %435 = vmatpush1.msra.mxu0 0.0
        %436 = vmatprep.subr.mxu0 0.0
        %437 = vmatpush1.msra.mxu0 0.0
        %438 = vmatprep.subr.mxu0 0.0
        %439 = vmatpush1.msra.mxu0 0.0
        %440 = vmatprep.subr.mxu0 0.0
        %441 = vmatpush1.msra.mxu0 0.0
        %442 = vmatprep.subr.mxu0 0.0
        %443 = vmatpush1.msra.mxu0 0.0
        %444 = vmatprep.subr.mxu0 0.0
        %445 = vmatpush1.msra.mxu0 0.0
        %446 = vmatprep.subr.mxu0 0.0
        %447 = vmatpush1.msra.mxu0 0.0
        %448 = vmatprep.subr.mxu0 0.0
        %449 = vmatpush1.msra.mxu0 0.0
        %450 = vmatprep.subr.mxu0 0.0
        %451 = vmatpush1.msra.mxu0 0.0
        %452 = vmatprep.subr.mxu0 0.0
        %453 = vmatpush1.msra.mxu0 0.0
        %454 = vmatprep.subr.mxu0 0.0
        %455 = vmatpush1.msra.mxu0 0.0
        %456 = vmatprep.subr.mxu0 0.0
        %457 = vmatpush1.msra.mxu0 0.0
        %458 = vmatprep.subr.mxu0 0.0
        %459 = vmatpush1.msra.mxu0 0.0
        %460 = vmatprep.subr.mxu0 0.0
        %461 = vmatpush1.msra.mxu0 0.0
        %462 = vmatprep.subr.mxu0 0.0
        %463 = vmatpush1.msra.mxu0 0.0
        %464 = vmatprep.subr.mxu0 0.0
        %465 = vmatpush1.msra.mxu0 0.0
        %466 = vmatprep.subr.mxu0 0.0
        %467 = vmatpush1.msra.mxu0 0.0
        %468 = vmatprep.subr.mxu0 0.0
        %469 = vmatpush1.msra.mxu0 0.0
        %470 = vmatprep.subr.mxu0 0.0
        %471 = vmatpush1.msra.mxu0 0.0
        %472 = vmatprep.subr.mxu0 0.0
        %473 = vmatpush1.msra.mxu0 0.0
        %474 = vmatprep.subr.mxu0 0.0
        %475 = vmatpush1.msra.mxu0 0.0
        %476 = vmatprep.subr.mxu0 0.0
        %477 = vmatpush1.msra.mxu0 0.0
        %478 = vmatprep.mubr.f32.mxu0 0.0
        %479 = vmatmul.mubr.f32.gmra.mrb[0].mxu0 %v269
        %v480 = vpop.f32.mrb[0].mxu0
        %v481 = vadd.f32 0.0, %v480
        %v482 = vpop.f32.mrb[0].mxu0
        %v483 = vadd.f32 0.0, %v482
        %484 = vmatprep.mubr.f32.mxu0 0.0
        %485 = vmatmul.mubr.f32.gmra.mrb[0].mxu0 %v272
        %v486 = vpop.f32.mrb[0].mxu0
        %v487 = vadd.f32 0.0, %v486
        %v488 = vpop.f32.mrb[0].mxu0
        %v489 = vadd.f32 0.0, %v488
        %490 = vmatprep.mubr.f32.mxu0 0.0
        %491 = vmatmul.mubr.f32.gmra.mrb[0].mxu0 %v275
        %v492 = vpop.f32.mrb[0].mxu0
        %v493 = vadd.f32 0.0, %v492
        %v494 = vpop.f32.mrb[0].mxu0
        %v495 = vadd.f32 0.0, %v494
        %496 = vmatprep.mubr.f32.mxu0 0.0
        %497 = vmatmul.mubr.f32.gmra.mrb[0].mxu0 %v278
        %v498 = vpop.f32.mrb[0].mxu0
        %v499 = vadd.f32 0.0, %v498
        %v500 = vpop.f32.mrb[0].mxu0
        %v501 = vadd.f32 0.0, %v500
        %502 = vmatprep.mubr.f32.mxu0 0.0
        %503 = vmatmul.mubr.f32.gmra.mrb[0].mxu0 %v281
        %v504 = vpop.f32.mrb[0].mxu0
        %v505 = vadd.f32 0.0, %v504
        %v506 = vpop.f32.mrb[0].mxu0
        %v507 = vadd.f32 0.0, %v506
        %508 = vmatprep.mubr.f32.mxu0 0.0
        %509 = vmatmul.mubr.f32.gmra.mrb[0].mxu0 %v284
        %v510 = vpop.f32.mrb[0].mxu0
        %v511 = vadd.f32 0.0, %v510
        %v512 = vpop.f32.mrb[0].mxu0
        %v513 = vadd.f32 0.0, %v512
        %514 = vmatprep.mubr.f32.mxu0 0.0
        %515 = vmatmul.mubr.f32.gmra.mrb[0].mxu0 %v287
        %v516 = vpop.f32.mrb[0].mxu0
        %v517 = vadd.f32 0.0, %v516
        %v518 = vpop.f32.mrb[0].mxu0
        %v519 = vadd.f32 0.0, %v518
        %520 = vmatprep.mubr.f32.mxu0 0.0
        %521 = vmatmul.mubr.f32.gmra.mrb[0].mxu0 %v290
        %v522 = vpop.f32.mrb[0].mxu0
        %v523 = vadd.f32 0.0, %v522
        %v524 = vpop.f32.mrb[0].mxu0
        %v525 = vadd.f32 0.0, %v524
        %526 = vdwg.mxu0
        %v527 = vld [vmem:[%s4] sm:$0xff]
        %v528 = vld [vmem:[%s4 + $0x8] sm:$0xff]
        %v529 = vld [vmem:[%s4 + $0x10] sm:$0xff]
        %v530 = vld [vmem:[%s4 + $0x18] sm:$0xff]
        %532 = vset.pattern.permute.xlu0 0
        %533 = vperm.xlu0 %532, %v527
        %v534 = vpop.permute.xlu0 %533
        %537 = vset.pattern.permute.xlu0 0
        %538 = vperm.xlu0 %537, %v528
        %v539 = vpop.permute.xlu0 %538
        %542 = vset.pattern.permute.xlu0 0
        %543 = vperm.xlu0 %542, %v529
        %v544 = vpop.permute.xlu0 %543
        %547 = vset.pattern.permute.xlu0 0
        %548 = vperm.xlu0 %547, %v530
        %v549 = vpop.permute.xlu0 %548
        %v551 = vadd.f32 %v368, %v534
        %v552 = vadd.f32 %v370, %v534
        %v553 = vadd.f32 %v481, %v534
        %v554 = vadd.f32 %v483, %v534
        %v555 = vadd.f32 %v374, %v539
        %v556 = vadd.f32 %v376, %v539
        %v557 = vadd.f32 %v487, %v539
        %v558 = vadd.f32 %v489, %v539
        %v559 = vadd.f32 %v380, %v544
        %v560 = vadd.f32 %v382, %v544
        %v561 = vadd.f32 %v493, %v544
        %v562 = vadd.f32 %v495, %v544
        %v563 = vadd.f32 %v386, %v549
        %v564 = vadd.f32 %v388, %v549
        %v565 = vadd.f32 %v499, %v549
        %v566 = vadd.f32 %v501, %v549
        %v567 = vmul.f32 %v551, 0.01
        %v568 = vmul.f32 %v552, 0.01
        %v569 = vmul.f32 %v553, 0.01
        %v570 = vmul.f32 %v554, 0.01
        %v571 = vmul.f32 %v555, 0.01
        %v572 = vmul.f32 %v556, 0.01
        %v573 = vmul.f32 %v557, 0.01
        %v574 = vmul.f32 %v558, 0.01
        %v575 = vmul.f32 %v559, 0.01
        %v576 = vmul.f32 %v560, 0.01
        %v577 = vmul.f32 %v561, 0.01
        %v578 = vmul.f32 %v562, 0.01
        %v579 = vmul.f32 %v563, 0.01
        %v580 = vmul.f32 %v564, 0.01
        %v581 = vmul.f32 %v565, 0.01
        %v582 = vmul.f32 %v566, 0.01
        %v583 = vmax.f32 %v551, %v567
        %v584 = vmax.f32 %v552, %v568
        %v585 = vmax.f32 %v553, %v569
        %v586 = vmax.f32 %v554, %v570
        %v587 = vmax.f32 %v555, %v571
        %v588 = vmax.f32 %v556, %v572
        %v589 = vmax.f32 %v557, %v573
        %v590 = vmax.f32 %v558, %v574
        %v591 = vmax.f32 %v559, %v575
        %v592 = vmax.f32 %v560, %v576
        %v593 = vmax.f32 %v561, %v577
        %v594 = vmax.f32 %v562, %v578
        %v595 = vmax.f32 %v563, %v579
        %v596 = vmax.f32 %v564, %v580
        %v597 = vmax.f32 %v565, %v581
        %v598 = vmax.f32 %v566, %v582
        %v599 = vld [vmem:[%s2] sm:$0xff]
        %v600 = vld [vmem:[%s2 + $0x8] sm:$0xff]
        %v601 = vld [vmem:[%s2 + $0x10] sm:$0xff]
        %v602 = vld [vmem:[%s2 + $0x18] sm:$0xff]
        %v603 = vld [vmem:[%s4 + $0x20] sm:$0xff]
        %v604 = vld [vmem:[%s4 + $0x28] sm:$0xff]
        %v605 = vld [vmem:[%s4 + $0x30] sm:$0xff]
        %v606 = vld [vmem:[%s4 + $0x38] sm:$0xff]
        %608 = vset.pattern.permute.xlu0 0
        %609 = vperm.xlu0 %608, %v603
        %v610 = vpop.permute.xlu0 %609
        %613 = vset.pattern.permute.xlu0 0
        %614 = vperm.xlu0 %613, %v604
        %v615 = vpop.permute.xlu0 %614
        %618 = vset.pattern.permute.xlu0 0
        %619 = vperm.xlu0 %618, %v605
        %v620 = vpop.permute.xlu0 %619
        %623 = vset.pattern.permute.xlu0 0
        %624 = vperm.xlu0 %623, %v606
        %v625 = vpop.permute.xlu0 %624
        %vm627 = vcmask 261120
        %v629 = vsel %vm627, %v599, 0
        %v632 = vsel %vm627, %v600, 0
        %v635 = vsel %vm627, %v601, 0
        %v638 = vsel %vm627, %v602, 0
        %640 = vmatprep.subr.mxu0 %v584
        %641 = vmatpush1.msra.mxu0 %v583
        %642 = vmatprep.subr.mxu0 %v588
        %643 = vmatpush1.msra.mxu0 %v587
        %644 = vmatprep.subr.mxu0 %v592
        %645 = vmatpush1.msra.mxu0 %v591
        %646 = vmatprep.subr.mxu0 %v596
        %647 = vmatpush1.msra.mxu0 %v595
        %648 = vmatprep.subr.mxu0 0.0
        %649 = vmatpush1.msra.mxu0 0.0
        %650 = vmatprep.subr.mxu0 0.0
        %651 = vmatpush1.msra.mxu0 0.0
        %652 = vmatprep.subr.mxu0 0.0
        %653 = vmatpush1.msra.mxu0 0.0
        %654 = vmatprep.subr.mxu0 0.0
        %655 = vmatpush1.msra.mxu0 0.0
        %656 = vmatprep.subr.mxu0 0.0
        %657 = vmatpush1.msra.mxu0 0.0
        %658 = vmatprep.subr.mxu0 0.0
        %659 = vmatpush1.msra.mxu0 0.0
        %660 = vmatprep.subr.mxu0 0.0
        %661 = vmatpush1.msra.mxu0 0.0
        %662 = vmatprep.subr.mxu0 0.0
        %663 = vmatpush1.msra.mxu0 0.0
        %664 = vmatprep.subr.mxu0 0.0
        %665 = vmatpush1.msra.mxu0 0.0
        %666 = vmatprep.subr.mxu0 0.0
        %667 = vmatpush1.msra.mxu0 0.0
        %668 = vmatprep.subr.mxu0 0.0
        %669 = vmatpush1.msra.mxu0 0.0
        %670 = vmatprep.subr.mxu0 0.0
        %671 = vmatpush1.msra.mxu0 0.0
        %672 = vmatprep.subr.mxu0 0.0
        %673 = vmatpush1.msra.mxu0 0.0
        %674 = vmatprep.subr.mxu0 0.0
        %675 = vmatpush1.msra.mxu0 0.0
        %676 = vmatprep.subr.mxu0 0.0
        %677 = vmatpush1.msra.mxu0 0.0
        %678 = vmatprep.subr.mxu0 0.0
        %679 = vmatpush1.msra.mxu0 0.0
        %680 = vmatprep.subr.mxu0 0.0
        %681 = vmatpush1.msra.mxu0 0.0
        %682 = vmatprep.subr.mxu0 0.0
        %683 = vmatpush1.msra.mxu0 0.0
        %684 = vmatprep.subr.mxu0 0.0
        %685 = vmatpush1.msra.mxu0 0.0
        %686 = vmatprep.subr.mxu0 0.0
        %687 = vmatpush1.msra.mxu0 0.0
        %688 = vmatprep.subr.mxu0 0.0
        %689 = vmatpush1.msra.mxu0 0.0
        %690 = vmatprep.subr.mxu0 0.0
        %691 = vmatpush1.msra.mxu0 0.0
        %692 = vmatprep.subr.mxu0 0.0
        %693 = vmatpush1.msra.mxu0 0.0
        %694 = vmatprep.subr.mxu0 0.0
        %695 = vmatpush1.msra.mxu0 0.0
        %696 = vmatprep.subr.mxu0 0.0
        %697 = vmatpush1.msra.mxu0 0.0
        %698 = vmatprep.subr.mxu0 0.0
        %699 = vmatpush1.msra.mxu0 0.0
        %700 = vmatprep.subr.mxu0 0.0
        %701 = vmatpush1.msra.mxu0 0.0
        %702 = vmatprep.subr.mxu0 0.0
        %703 = vmatpush1.msra.mxu0 0.0
        %704 = vmatprep.mubr.f32.mxu0 0.0
        %705 = vmatmul.mubr.f32.gmra.mrb[0].mxu0 %v629
        %v706 = vpop.f32.mrb[0].mxu0
        %v707 = vadd.f32 %v610, %v706
        %v708 = vpop.f32.mrb[0].mxu0
        %v709 = vadd.f32 %v610, %v708
        %710 = vmatprep.mubr.f32.mxu0 0.0
        %711 = vmatmul.mubr.f32.gmra.mrb[0].mxu0 %v632
        %v712 = vpop.f32.mrb[0].mxu0
        %v713 = vadd.f32 %v615, %v712
        %v714 = vpop.f32.mrb[0].mxu0
        %v715 = vadd.f32 %v615, %v714
        %716 = vmatprep.mubr.f32.mxu0 0.0
        %717 = vmatmul.mubr.f32.gmra.mrb[0].mxu0 %v635
        %v718 = vpop.f32.mrb[0].mxu0
        %v719 = vadd.f32 %v620, %v718
        %v720 = vpop.f32.mrb[0].mxu0
        %v721 = vadd.f32 %v620, %v720
        %722 = vmatprep.mubr.f32.mxu0 0.0
        %723 = vmatmul.mubr.f32.gmra.mrb[0].mxu0 %v638
        %v724 = vpop.f32.mrb[0].mxu0
        %v725 = vadd.f32 %v625, %v724
        %v726 = vpop.f32.mrb[0].mxu0
        %v727 = vadd.f32 %v625, %v726
        %728 = vdwg.mxu0
        %729 = vmatprep.subr.mxu0 %v586
        %730 = vmatpush1.msra.mxu0 %v585
        %731 = vmatprep.subr.mxu0 %v590
        %732 = vmatpush1.msra.mxu0 %v589
        %733 = vmatprep.subr.mxu0 %v594
        %734 = vmatpush1.msra.mxu0 %v593
        %735 = vmatprep.subr.mxu0 %v598
        %736 = vmatpush1.msra.mxu0 %v597
        %737 = vmatprep.subr.mxu0 0.0
        %738 = vmatpush1.msra.mxu0 0.0
        %739 = vmatprep.subr.mxu0 0.0
        %740 = vmatpush1.msra.mxu0 0.0
        %741 = vmatprep.subr.mxu0 0.0
        %742 = vmatpush1.msra.mxu0 0.0
        %743 = vmatprep.subr.mxu0 0.0
        %744 = vmatpush1.msra.mxu0 0.0
        %745 = vmatprep.subr.mxu0 0.0
        %746 = vmatpush1.msra.mxu0 0.0
        %747 = vmatprep.subr.mxu0 0.0
        %748 = vmatpush1.msra.mxu0 0.0
        %749 = vmatprep.subr.mxu0 0.0
        %750 = vmatpush1.msra.mxu0 0.0
        %751 = vmatprep.subr.mxu0 0.0
        %752 = vmatpush1.msra.mxu0 0.0
        %753 = vmatprep.subr.mxu0 0.0
        %754 = vmatpush1.msra.mxu0 0.0
        %755 = vmatprep.subr.mxu0 0.0
        %756 = vmatpush1.msra.mxu0 0.0
        %757 = vmatprep.subr.mxu0 0.0
        %758 = vmatpush1.msra.mxu0 0.0
        %759 = vmatprep.subr.mxu0 0.0
        %760 = vmatpush1.msra.mxu0 0.0
        %761 = vmatprep.subr.mxu0 0.0
        %762 = vmatpush1.msra.mxu0 0.0
        %763 = vmatprep.subr.mxu0 0.0
        %764 = vmatpush1.msra.mxu0 0.0
        %765 = vmatprep.subr.mxu0 0.0
        %766 = vmatpush1.msra.mxu0 0.0
        %767 = vmatprep.subr.mxu0 0.0
        %768 = vmatpush1.msra.mxu0 0.0
        %769 = vmatprep.subr.mxu0 0.0
        %770 = vmatpush1.msra.mxu0 0.0
        %771 = vmatprep.subr.mxu0 0.0
        %772 = vmatpush1.msra.mxu0 0.0
        %773 = vmatprep.subr.mxu0 0.0
        %774 = vmatpush1.msra.mxu0 0.0
        %775 = vmatprep.subr.mxu0 0.0
        %776 = vmatpush1.msra.mxu0 0.0
        %777 = vmatprep.subr.mxu0 0.0
        %778 = vmatpush1.msra.mxu0 0.0
        %779 = vmatprep.subr.mxu0 0.0
        %780 = vmatpush1.msra.mxu0 0.0
        %781 = vmatprep.subr.mxu0 0.0
        %782 = vmatpush1.msra.mxu0 0.0
        %783 = vmatprep.subr.mxu0 0.0
        %784 = vmatpush1.msra.mxu0 0.0
        %785 = vmatprep.subr.mxu0 0.0
        %786 = vmatpush1.msra.mxu0 0.0
        %787 = vmatprep.subr.mxu0 0.0
        %788 = vmatpush1.msra.mxu0 0.0
        %789 = vmatprep.subr.mxu0 0.0
        %790 = vmatpush1.msra.mxu0 0.0
        %791 = vmatprep.subr.mxu0 0.0
        %792 = vmatpush1.msra.mxu0 0.0
        %793 = vmatprep.mubr.f32.mxu0 0.0
        %794 = vmatmul.mubr.f32.gmra.mrb[0].mxu0 %v629
        %v795 = vpop.f32.mrb[0].mxu0
        %v796 = vadd.f32 %v610, %v795
        %v797 = vpop.f32.mrb[0].mxu0
        %v798 = vadd.f32 %v610, %v797
        %799 = vmatprep.mubr.f32.mxu0 0.0
        %800 = vmatmul.mubr.f32.gmra.mrb[0].mxu0 %v632
        %v801 = vpop.f32.mrb[0].mxu0
        %v802 = vadd.f32 %v615, %v801
        %v803 = vpop.f32.mrb[0].mxu0
        %v804 = vadd.f32 %v615, %v803
        %805 = vmatprep.mubr.f32.mxu0 0.0
        %806 = vmatmul.mubr.f32.gmra.mrb[0].mxu0 %v635
        %v807 = vpop.f32.mrb[0].mxu0
        %v808 = vadd.f32 %v620, %v807
        %v809 = vpop.f32.mrb[0].mxu0
        %v810 = vadd.f32 %v620, %v809
        %811 = vmatprep.mubr.f32.mxu0 0.0
        %812 = vmatmul.mubr.f32.gmra.mrb[0].mxu0 %v638
        %v813 = vpop.f32.mrb[0].mxu0
        %v814 = vadd.f32 %v625, %v813
        %v815 = vpop.f32.mrb[0].mxu0
        %v816 = vadd.f32 %v625, %v815
        %817 = vdwg.mxu0
        %v818 = vmul.f32 %v707, 0.01
        %v819 = vmul.f32 %v709, 0.01
        %v820 = vmul.f32 %v796, 0.01
        %v821 = vmul.f32 %v798, 0.01
        %v822 = vmul.f32 %v713, 0.01
        %v823 = vmul.f32 %v715, 0.01
        %v824 = vmul.f32 %v802, 0.01
        %v825 = vmul.f32 %v804, 0.01
        %v826 = vmul.f32 %v719, 0.01
        %v827 = vmul.f32 %v721, 0.01
        %v828 = vmul.f32 %v808, 0.01
        %v829 = vmul.f32 %v810, 0.01
        %v830 = vmul.f32 %v725, 0.01
        %v831 = vmul.f32 %v727, 0.01
        %v832 = vmul.f32 %v814, 0.01
        %v833 = vmul.f32 %v816, 0.01
        %v834 = vmax.f32 %v707, %v818
        %v835 = vmax.f32 %v709, %v819
        %v836 = vmax.f32 %v796, %v820
        %v837 = vmax.f32 %v798, %v821
        %v838 = vmax.f32 %v713, %v822
        %v839 = vmax.f32 %v715, %v823
        %v840 = vmax.f32 %v802, %v824
        %v841 = vmax.f32 %v804, %v825
        %v842 = vmax.f32 %v719, %v826
        %v843 = vmax.f32 %v721, %v827
        %v844 = vmax.f32 %v808, %v828
        %v845 = vmax.f32 %v810, %v829
        %v846 = vmax.f32 %v725, %v830
        %v847 = vmax.f32 %v727, %v831
        %v848 = vmax.f32 %v814, %v832
        %v849 = vmax.f32 %v816, %v833
        %v850 = vld [vmem:[%s2 + $0x20] sm:$0xff]
        %v851 = vld [vmem:[%s2 + $0x28] sm:$0xff]
        %v852 = vld [vmem:[%s2 + $0x30] sm:$0xff]
        %v853 = vld [vmem:[%s2 + $0x38] sm:$0xff]
        %v855 = vsel %vm627, %v850, 0
        %v858 = vsel %vm627, %v851, 0
        %v861 = vsel %vm627, %v852, 0
        %v864 = vsel %vm627, %v853, 0
        %866 = vmatprep.subr.mxu0 %v835
        %867 = vmatpush1.msra.mxu0 %v834
        %868 = vmatprep.subr.mxu0 %v839
        %869 = vmatpush1.msra.mxu0 %v838
        %870 = vmatprep.subr.mxu0 %v843
        %871 = vmatpush1.msra.mxu0 %v842
        %872 = vmatprep.subr.mxu0 %v847
        %873 = vmatpush1.msra.mxu0 %v846
        %874 = vmatprep.subr.mxu0 0.0
        %875 = vmatpush1.msra.mxu0 0.0
        %876 = vmatprep.subr.mxu0 0.0
        %877 = vmatpush1.msra.mxu0 0.0
        %878 = vmatprep.subr.mxu0 0.0
        %879 = vmatpush1.msra.mxu0 0.0
        %880 = vmatprep.subr.mxu0 0.0
        %881 = vmatpush1.msra.mxu0 0.0
        %882 = vmatprep.subr.mxu0 0.0
        %883 = vmatpush1.msra.mxu0 0.0
        %884 = vmatprep.subr.mxu0 0.0
        %885 = vmatpush1.msra.mxu0 0.0
        %886 = vmatprep.subr.mxu0 0.0
        %887 = vmatpush1.msra.mxu0 0.0
        %888 = vmatprep.subr.mxu0 0.0
        %889 = vmatpush1.msra.mxu0 0.0
        %890 = vmatprep.subr.mxu0 0.0
        %891 = vmatpush1.msra.mxu0 0.0
        %892 = vmatprep.subr.mxu0 0.0
        %893 = vmatpush1.msra.mxu0 0.0
        %894 = vmatprep.subr.mxu0 0.0
        %895 = vmatpush1.msra.mxu0 0.0
        %896 = vmatprep.subr.mxu0 0.0
        %897 = vmatpush1.msra.mxu0 0.0
        %898 = vmatprep.subr.mxu0 0.0
        %899 = vmatpush1.msra.mxu0 0.0
        %900 = vmatprep.subr.mxu0 0.0
        %901 = vmatpush1.msra.mxu0 0.0
        %902 = vmatprep.subr.mxu0 0.0
        %903 = vmatpush1.msra.mxu0 0.0
        %904 = vmatprep.subr.mxu0 0.0
        %905 = vmatpush1.msra.mxu0 0.0
        %906 = vmatprep.subr.mxu0 0.0
        %907 = vmatpush1.msra.mxu0 0.0
        %908 = vmatprep.subr.mxu0 0.0
        %909 = vmatpush1.msra.mxu0 0.0
        %910 = vmatprep.subr.mxu0 0.0
        %911 = vmatpush1.msra.mxu0 0.0
        %912 = vmatprep.subr.mxu0 0.0
        %913 = vmatpush1.msra.mxu0 0.0
        %914 = vmatprep.subr.mxu0 0.0
        %915 = vmatpush1.msra.mxu0 0.0
        %916 = vmatprep.subr.mxu0 0.0
        %917 = vmatpush1.msra.mxu0 0.0
        %918 = vmatprep.subr.mxu0 0.0
        %919 = vmatpush1.msra.mxu0 0.0
        %920 = vmatprep.subr.mxu0 0.0
        %921 = vmatpush1.msra.mxu0 0.0
        %922 = vmatprep.subr.mxu0 0.0
        %923 = vmatpush1.msra.mxu0 0.0
        %924 = vmatprep.subr.mxu0 0.0
        %925 = vmatpush1.msra.mxu0 0.0
        %926 = vmatprep.subr.mxu0 0.0
        %927 = vmatpush1.msra.mxu0 0.0
        %928 = vmatprep.subr.mxu0 0.0
        %929 = vmatpush1.msra.mxu0 0.0
        %930 = vmatprep.mubr.f32.mxu0 0.0
        %931 = vmatmul.mubr.f32.gmra.mrb[0].mxu0 %v855
        %v932 = vpop.f32.mrb[0].mxu0
        %v933 = vadd.f32 %v392, %v932
        %v934 = vpop.f32.mrb[0].mxu0
        %v935 = vadd.f32 %v394, %v934
        %936 = vmatprep.mubr.f32.mxu0 0.0
        %937 = vmatmul.mubr.f32.gmra.mrb[0].mxu0 %v858
        %v938 = vpop.f32.mrb[0].mxu0
        %v939 = vadd.f32 %v398, %v938
        %v940 = vpop.f32.mrb[0].mxu0
        %v941 = vadd.f32 %v400, %v940
        %942 = vmatprep.mubr.f32.mxu0 0.0
        %943 = vmatmul.mubr.f32.gmra.mrb[0].mxu0 %v861
        %v944 = vpop.f32.mrb[0].mxu0
        %v945 = vadd.f32 %v404, %v944
        %v946 = vpop.f32.mrb[0].mxu0
        %v947 = vadd.f32 %v406, %v946
        %948 = vmatprep.mubr.f32.mxu0 0.0
        %949 = vmatmul.mubr.f32.gmra.mrb[0].mxu0 %v864
        %v950 = vpop.f32.mrb[0].mxu0
        %v951 = vadd.f32 %v410, %v950
        %v952 = vpop.f32.mrb[0].mxu0
        %v953 = vadd.f32 %v412, %v952
        %954 = vdwg.mxu0
        %955 = vmatprep.subr.mxu0 %v837
        %956 = vmatpush1.msra.mxu0 %v836
        %957 = vmatprep.subr.mxu0 %v841
        %958 = vmatpush1.msra.mxu0 %v840
        %959 = vmatprep.subr.mxu0 %v845
        %960 = vmatpush1.msra.mxu0 %v844
        %961 = vmatprep.subr.mxu0 %v849
        %962 = vmatpush1.msra.mxu0 %v848
        %963 = vmatprep.subr.mxu0 0.0
        %964 = vmatpush1.msra.mxu0 0.0
        %965 = vmatprep.subr.mxu0 0.0
        %966 = vmatpush1.msra.mxu0 0.0
        %967 = vmatprep.subr.mxu0 0.0
        %968 = vmatpush1.msra.mxu0 0.0
        %969 = vmatprep.subr.mxu0 0.0
        %970 = vmatpush1.msra.mxu0 0.0
        %971 = vmatprep.subr.mxu0 0.0
        %972 = vmatpush1.msra.mxu0 0.0
        %973 = vmatprep.subr.mxu0 0.0
        %974 = vmatpush1.msra.mxu0 0.0
        %975 = vmatprep.subr.mxu0 0.0
        %976 = vmatpush1.msra.mxu0 0.0
        %977 = vmatprep.subr.mxu0 0.0
        %978 = vmatpush1.msra.mxu0 0.0
        %979 = vmatprep.subr.mxu0 0.0
        %980 = vmatpush1.msra.mxu0 0.0
        %981 = vmatprep.subr.mxu0 0.0
        %982 = vmatpush1.msra.mxu0 0.0
        %983 = vmatprep.subr.mxu0 0.0
        %984 = vmatpush1.msra.mxu0 0.0
        %985 = vmatprep.subr.mxu0 0.0
        %986 = vmatpush1.msra.mxu0 0.0
        %987 = vmatprep.subr.mxu0 0.0
        %988 = vmatpush1.msra.mxu0 0.0
        %989 = vmatprep.subr.mxu0 0.0
        %990 = vmatpush1.msra.mxu0 0.0
        %991 = vmatprep.subr.mxu0 0.0
        %992 = vmatpush1.msra.mxu0 0.0
        %993 = vmatprep.subr.mxu0 0.0
        %994 = vmatpush1.msra.mxu0 0.0
        %995 = vmatprep.subr.mxu0 0.0
        %996 = vmatpush1.msra.mxu0 0.0
        %997 = vmatprep.subr.mxu0 0.0
        %998 = vmatpush1.msra.mxu0 0.0
        %999 = vmatprep.subr.mxu0 0.0
        %1000 = vmatpush1.msra.mxu0 0.0
        %1001 = vmatprep.subr.mxu0 0.0
        %1002 = vmatpush1.msra.mxu0 0.0
        %1003 = vmatprep.subr.mxu0 0.0
        %1004 = vmatpush1.msra.mxu0 0.0
        %1005 = vmatprep.subr.mxu0 0.0
        %1006 = vmatpush1.msra.mxu0 0.0
        %1007 = vmatprep.subr.mxu0 0.0
        %1008 = vmatpush1.msra.mxu0 0.0
        %1009 = vmatprep.subr.mxu0 0.0
        %1010 = vmatpush1.msra.mxu0 0.0
        %1011 = vmatprep.subr.mxu0 0.0
        %1012 = vmatpush1.msra.mxu0 0.0
        %1013 = vmatprep.subr.mxu0 0.0
        %1014 = vmatpush1.msra.mxu0 0.0
        %1015 = vmatprep.subr.mxu0 0.0
        %1016 = vmatpush1.msra.mxu0 0.0
        %1017 = vmatprep.subr.mxu0 0.0
        %1018 = vmatpush1.msra.mxu0 0.0
        %1019 = vmatprep.mubr.f32.mxu0 0.0
        %1020 = vmatmul.mubr.f32.gmra.mrb[0].mxu0 %v855
        %v1021 = vpop.f32.mrb[0].mxu0
        %v1022 = vadd.f32 %v505, %v1021
        %v1023 = vpop.f32.mrb[0].mxu0
        %v1024 = vadd.f32 %v507, %v1023
        %1025 = vmatprep.mubr.f32.mxu0 0.0
        %1026 = vmatmul.mubr.f32.gmra.mrb[0].mxu0 %v858
        %v1027 = vpop.f32.mrb[0].mxu0
        %v1028 = vadd.f32 %v511, %v1027
        %v1029 = vpop.f32.mrb[0].mxu0
        %v1030 = vadd.f32 %v513, %v1029
        %1031 = vmatprep.mubr.f32.mxu0 0.0
        %1032 = vmatmul.mubr.f32.gmra.mrb[0].mxu0 %v861
        %v1033 = vpop.f32.mrb[0].mxu0
        %v1034 = vadd.f32 %v517, %v1033
        %v1035 = vpop.f32.mrb[0].mxu0
        %v1036 = vadd.f32 %v519, %v1035
        %1037 = vmatprep.mubr.f32.mxu0 0.0
        %1038 = vmatmul.mubr.f32.gmra.mrb[0].mxu0 %v864
        %v1039 = vpop.f32.mrb[0].mxu0
        %v1040 = vadd.f32 %v523, %v1039
        %v1041 = vpop.f32.mrb[0].mxu0
        %v1042 = vadd.f32 %v525, %v1041
        %1043 = vdwg.mxu0
        %v1044 = vld [vmem:[%s4 + $0x40] sm:$0xff]
        %v1045 = vld [vmem:[%s4 + $0x48] sm:$0xff]
        %v1046 = vld [vmem:[%s4 + $0x50] sm:$0xff]
        %v1047 = vld [vmem:[%s4 + $0x58] sm:$0xff]
        %1049 = vset.pattern.permute.xlu0 0
        %1050 = vperm.xlu0 %1049, %v1044
        %v1051 = vpop.permute.xlu0 %1050
        %1054 = vset.pattern.permute.xlu0 0
        %1055 = vperm.xlu0 %1054, %v1045
        %v1056 = vpop.permute.xlu0 %1055
        %1059 = vset.pattern.permute.xlu0 0
        %1060 = vperm.xlu0 %1059, %v1046
        %v1061 = vpop.permute.xlu0 %1060
        %1064 = vset.pattern.permute.xlu0 0
        %1065 = vperm.xlu0 %1064, %v1047
        %v1066 = vpop.permute.xlu0 %1065
        %v1068 = vadd.f32 %v933, %v1051
        %v1069 = vadd.f32 %v935, %v1051
        %v1070 = vadd.f32 %v1022, %v1051
        %v1071 = vadd.f32 %v1024, %v1051
        %v1072 = vadd.f32 %v939, %v1056
        %v1073 = vadd.f32 %v941, %v1056
        %v1074 = vadd.f32 %v1028, %v1056
        %v1075 = vadd.f32 %v1030, %v1056
        %v1076 = vadd.f32 %v945, %v1061
        %v1077 = vadd.f32 %v947, %v1061
        %v1078 = vadd.f32 %v1034, %v1061
        %v1079 = vadd.f32 %v1036, %v1061
        %v1080 = vadd.f32 %v951, %v1066
        %v1081 = vadd.f32 %v953, %v1066
        %v1082 = vadd.f32 %v1040, %v1066
        %v1083 = vadd.f32 %v1042, %v1066
        %v1084 = vmul.f32 %v1068, 0.01
        %v1085 = vmul.f32 %v1069, 0.01
        %v1086 = vmul.f32 %v1070, 0.01
        %v1087 = vmul.f32 %v1071, 0.01
        %v1088 = vmul.f32 %v1072, 0.01
        %v1089 = vmul.f32 %v1073, 0.01
        %v1090 = vmul.f32 %v1074, 0.01
        %v1091 = vmul.f32 %v1075, 0.01
        %v1092 = vmul.f32 %v1076, 0.01
        %v1093 = vmul.f32 %v1077, 0.01
        %v1094 = vmul.f32 %v1078, 0.01
        %v1095 = vmul.f32 %v1079, 0.01
        %v1096 = vmul.f32 %v1080, 0.01
        %v1097 = vmul.f32 %v1081, 0.01
        %v1098 = vmul.f32 %v1082, 0.01
        %v1099 = vmul.f32 %v1083, 0.01
        %v1100 = vmax.f32 %v1068, %v1084
        %v1101 = vmax.f32 %v1069, %v1085
        %v1102 = vmax.f32 %v1070, %v1086
        %v1103 = vmax.f32 %v1071, %v1087
        %v1104 = vmax.f32 %v1072, %v1088
        %v1105 = vmax.f32 %v1073, %v1089
        %v1106 = vmax.f32 %v1074, %v1090
        %v1107 = vmax.f32 %v1075, %v1091
        %v1108 = vmax.f32 %v1076, %v1092
        %v1109 = vmax.f32 %v1077, %v1093
        %v1110 = vmax.f32 %v1078, %v1094
        %v1111 = vmax.f32 %v1079, %v1095
        %v1112 = vmax.f32 %v1080, %v1096
        %v1113 = vmax.f32 %v1081, %v1097
        %v1114 = vmax.f32 %v1082, %v1098
        %v1115 = vmax.f32 %v1083, %v1099
        %v1116 = vld [vmem:[%s2 + $0x40] sm:$0xff]
        %v1117 = vld [vmem:[%s2 + $0x48] sm:$0xff]
        %v1118 = vld [vmem:[%s2 + $0x50] sm:$0xff]
        %v1119 = vld [vmem:[%s2 + $0x58] sm:$0xff]
        %v1120 = vld [vmem:[%s4 + $0x60] sm:$0xff]
        %v1121 = vld [vmem:[%s4 + $0x68] sm:$0xff]
        %v1122 = vld [vmem:[%s4 + $0x70] sm:$0xff]
        %v1123 = vld [vmem:[%s4 + $0x78] sm:$0xff]
        %1125 = vset.pattern.permute.xlu0 0
        %1126 = vperm.xlu0 %1125, %v1120
        %v1127 = vpop.permute.xlu0 %1126
        %1130 = vset.pattern.permute.xlu0 0
        %1131 = vperm.xlu0 %1130, %v1121
        %v1132 = vpop.permute.xlu0 %1131
        %1135 = vset.pattern.permute.xlu0 0
        %1136 = vperm.xlu0 %1135, %v1122
        %v1137 = vpop.permute.xlu0 %1136
        %1140 = vset.pattern.permute.xlu0 0
        %1141 = vperm.xlu0 %1140, %v1123
        %v1142 = vpop.permute.xlu0 %1141
        %v1145 = vsel %vm627, %v1116, 0
        %v1148 = vsel %vm627, %v1117, 0
        %v1151 = vsel %vm627, %v1118, 0
        %v1154 = vsel %vm627, %v1119, 0
        %1156 = vmatprep.subr.mxu0 %v1101
        %1157 = vmatpush1.msra.mxu0 %v1100
        %1158 = vmatprep.subr.mxu0 %v1105
        %1159 = vmatpush1.msra.mxu0 %v1104
        %1160 = vmatprep.subr.mxu0 %v1109
        %1161 = vmatpush1.msra.mxu0 %v1108
        %1162 = vmatprep.subr.mxu0 %v1113
        %1163 = vmatpush1.msra.mxu0 %v1112
        %1164 = vmatprep.subr.mxu0 0.0
        %1165 = vmatpush1.msra.mxu0 0.0
        %1166 = vmatprep.subr.mxu0 0.0
        %1167 = vmatpush1.msra.mxu0 0.0
        %1168 = vmatprep.subr.mxu0 0.0
        %1169 = vmatpush1.msra.mxu0 0.0
        %1170 = vmatprep.subr.mxu0 0.0
        %1171 = vmatpush1.msra.mxu0 0.0
        %1172 = vmatprep.subr.mxu0 0.0
        %1173 = vmatpush1.msra.mxu0 0.0
        %1174 = vmatprep.subr.mxu0 0.0
        %1175 = vmatpush1.msra.mxu0 0.0
        %1176 = vmatprep.subr.mxu0 0.0
        %1177 = vmatpush1.msra.mxu0 0.0
        %1178 = vmatprep.subr.mxu0 0.0
        %1179 = vmatpush1.msra.mxu0 0.0
        %1180 = vmatprep.subr.mxu0 0.0
        %1181 = vmatpush1.msra.mxu0 0.0
        %1182 = vmatprep.subr.mxu0 0.0
        %1183 = vmatpush1.msra.mxu0 0.0
        %1184 = vmatprep.subr.mxu0 0.0
        %1185 = vmatpush1.msra.mxu0 0.0
        %1186 = vmatprep.subr.mxu0 0.0
        %1187 = vmatpush1.msra.mxu0 0.0
        %1188 = vmatprep.subr.mxu0 0.0
        %1189 = vmatpush1.msra.mxu0 0.0
        %1190 = vmatprep.subr.mxu0 0.0
        %1191 = vmatpush1.msra.mxu0 0.0
        %1192 = vmatprep.subr.mxu0 0.0
        %1193 = vmatpush1.msra.mxu0 0.0
        %1194 = vmatprep.subr.mxu0 0.0
        %1195 = vmatpush1.msra.mxu0 0.0
        %1196 = vmatprep.subr.mxu0 0.0
        %1197 = vmatpush1.msra.mxu0 0.0
        %1198 = vmatprep.subr.mxu0 0.0
        %1199 = vmatpush1.msra.mxu0 0.0
        %1200 = vmatprep.subr.mxu0 0.0
        %1201 = vmatpush1.msra.mxu0 0.0
        %1202 = vmatprep.subr.mxu0 0.0
        %1203 = vmatpush1.msra.mxu0 0.0
        %1204 = vmatprep.subr.mxu0 0.0
        %1205 = vmatpush1.msra.mxu0 0.0
        %1206 = vmatprep.subr.mxu0 0.0
        %1207 = vmatpush1.msra.mxu0 0.0
        %1208 = vmatprep.subr.mxu0 0.0
        %1209 = vmatpush1.msra.mxu0 0.0
        %1210 = vmatprep.subr.mxu0 0.0
        %1211 = vmatpush1.msra.mxu0 0.0
        %1212 = vmatprep.subr.mxu0 0.0
        %1213 = vmatpush1.msra.mxu0 0.0
        %1214 = vmatprep.subr.mxu0 0.0
        %1215 = vmatpush1.msra.mxu0 0.0
        %1216 = vmatprep.subr.mxu0 0.0
        %1217 = vmatpush1.msra.mxu0 0.0
        %1218 = vmatprep.subr.mxu0 0.0
        %1219 = vmatpush1.msra.mxu0 0.0
        %1220 = vmatprep.mubr.f32.mxu0 0.0
        %1221 = vmatmul.mubr.f32.gmra.mrb[0].mxu0 %v1145
        %v1222 = vpop.f32.mrb[0].mxu0
        %v1223 = vadd.f32 %v1127, %v1222
        %v1224 = vpop.f32.mrb[0].mxu0
        %v1225 = vadd.f32 %v1127, %v1224
        %1226 = vmatprep.mubr.f32.mxu0 0.0
        %1227 = vmatmul.mubr.f32.gmra.mrb[0].mxu0 %v1148
        %v1228 = vpop.f32.mrb[0].mxu0
        %v1229 = vadd.f32 %v1132, %v1228
        %v1230 = vpop.f32.mrb[0].mxu0
        %v1231 = vadd.f32 %v1132, %v1230
        %1232 = vmatprep.mubr.f32.mxu0 0.0
        %1233 = vmatmul.mubr.f32.gmra.mrb[0].mxu0 %v1151
        %v1234 = vpop.f32.mrb[0].mxu0
        %v1235 = vadd.f32 %v1137, %v1234
        %v1236 = vpop.f32.mrb[0].mxu0
        %v1237 = vadd.f32 %v1137, %v1236
        %1238 = vmatprep.mubr.f32.mxu0 0.0
        %1239 = vmatmul.mubr.f32.gmra.mrb[0].mxu0 %v1154
        %v1240 = vpop.f32.mrb[0].mxu0
        %v1241 = vadd.f32 %v1142, %v1240
        %v1242 = vpop.f32.mrb[0].mxu0
        %v1243 = vadd.f32 %v1142, %v1242
        %1244 = vdwg.mxu0
        %1245 = vmatprep.subr.mxu0 %v1103
        %1246 = vmatpush1.msra.mxu0 %v1102
        %1247 = vmatprep.subr.mxu0 %v1107
        %1248 = vmatpush1.msra.mxu0 %v1106
        %1249 = vmatprep.subr.mxu0 %v1111
        %1250 = vmatpush1.msra.mxu0 %v1110
        %1251 = vmatprep.subr.mxu0 %v1115
        %1252 = vmatpush1.msra.mxu0 %v1114
        %1253 = vmatprep.subr.mxu0 0.0
        %1254 = vmatpush1.msra.mxu0 0.0
        %1255 = vmatprep.subr.mxu0 0.0
        %1256 = vmatpush1.msra.mxu0 0.0
        %1257 = vmatprep.subr.mxu0 0.0
        %1258 = vmatpush1.msra.mxu0 0.0
        %1259 = vmatprep.subr.mxu0 0.0
        %1260 = vmatpush1.msra.mxu0 0.0
        %1261 = vmatprep.subr.mxu0 0.0
        %1262 = vmatpush1.msra.mxu0 0.0
        %1263 = vmatprep.subr.mxu0 0.0
        %1264 = vmatpush1.msra.mxu0 0.0
        %1265 = vmatprep.subr.mxu0 0.0
        %1266 = vmatpush1.msra.mxu0 0.0
        %1267 = vmatprep.subr.mxu0 0.0
        %1268 = vmatpush1.msra.mxu0 0.0
        %1269 = vmatprep.subr.mxu0 0.0
        %1270 = vmatpush1.msra.mxu0 0.0
        %1271 = vmatprep.subr.mxu0 0.0
        %1272 = vmatpush1.msra.mxu0 0.0
        %1273 = vmatprep.subr.mxu0 0.0
        %1274 = vmatpush1.msra.mxu0 0.0
        %1275 = vmatprep.subr.mxu0 0.0
        %1276 = vmatpush1.msra.mxu0 0.0
        %1277 = vmatprep.subr.mxu0 0.0
        %1278 = vmatpush1.msra.mxu0 0.0
        %1279 = vmatprep.subr.mxu0 0.0
        %1280 = vmatpush1.msra.mxu0 0.0
        %1281 = vmatprep.subr.mxu0 0.0
        %1282 = vmatpush1.msra.mxu0 0.0
        %1283 = vmatprep.subr.mxu0 0.0
        %1284 = vmatpush1.msra.mxu0 0.0
        %1285 = vmatprep.subr.mxu0 0.0
        %1286 = vmatpush1.msra.mxu0 0.0
        %1287 = vmatprep.subr.mxu0 0.0
        %1288 = vmatpush1.msra.mxu0 0.0
        %1289 = vmatprep.subr.mxu0 0.0
        %1290 = vmatpush1.msra.mxu0 0.0
        %1291 = vmatprep.subr.mxu0 0.0
        %1292 = vmatpush1.msra.mxu0 0.0
        %1293 = vmatprep.subr.mxu0 0.0
        %1294 = vmatpush1.msra.mxu0 0.0
        %1295 = vmatprep.subr.mxu0 0.0
        %1296 = vmatpush1.msra.mxu0 0.0
        %1297 = vmatprep.subr.mxu0 0.0
        %1298 = vmatpush1.msra.mxu0 0.0
        %1299 = vmatprep.subr.mxu0 0.0
        %1300 = vmatpush1.msra.mxu0 0.0
        %1301 = vmatprep.subr.mxu0 0.0
        %1302 = vmatpush1.msra.mxu0 0.0
        %1303 = vmatprep.subr.mxu0 0.0
        %1304 = vmatpush1.msra.mxu0 0.0
        %1305 = vmatprep.subr.mxu0 0.0
        %1306 = vmatpush1.msra.mxu0 0.0
        %1307 = vmatprep.subr.mxu0 0.0
        %1308 = vmatpush1.msra.mxu0 0.0
        %1309 = vmatprep.mubr.f32.mxu0 0.0
        %1310 = vmatmul.mubr.f32.gmra.mrb[0].mxu0 %v1145
        %v1311 = vpop.f32.mrb[0].mxu0
        %v1312 = vadd.f32 %v1127, %v1311
        %v1313 = vpop.f32.mrb[0].mxu0
        %v1314 = vadd.f32 %v1127, %v1313
        %1315 = vmatprep.mubr.f32.mxu0 0.0
        %1316 = vmatmul.mubr.f32.gmra.mrb[0].mxu0 %v1148
        %v1317 = vpop.f32.mrb[0].mxu0
        %v1318 = vadd.f32 %v1132, %v1317
        %v1319 = vpop.f32.mrb[0].mxu0
        %v1320 = vadd.f32 %v1132, %v1319
        %1321 = vmatprep.mubr.f32.mxu0 0.0
        %1322 = vmatmul.mubr.f32.gmra.mrb[0].mxu0 %v1151
        %v1323 = vpop.f32.mrb[0].mxu0
        %v1324 = vadd.f32 %v1137, %v1323
        %v1325 = vpop.f32.mrb[0].mxu0
        %v1326 = vadd.f32 %v1137, %v1325
        %1327 = vmatprep.mubr.f32.mxu0 0.0
        %1328 = vmatmul.mubr.f32.gmra.mrb[0].mxu0 %v1154
        %v1329 = vpop.f32.mrb[0].mxu0
        %v1330 = vadd.f32 %v1142, %v1329
        %v1331 = vpop.f32.mrb[0].mxu0
        %v1332 = vadd.f32 %v1142, %v1331
        %1333 = vdwg.mxu0
        %v1334 = vmul.f32 %v1223, 0.01
        %v1335 = vmul.f32 %v1225, 0.01
        %v1336 = vmul.f32 %v1312, 0.01
        %v1337 = vmul.f32 %v1314, 0.01
        %v1338 = vmul.f32 %v1229, 0.01
        %v1339 = vmul.f32 %v1231, 0.01
        %v1340 = vmul.f32 %v1318, 0.01
        %v1341 = vmul.f32 %v1320, 0.01
        %v1342 = vmul.f32 %v1235, 0.01
        %v1343 = vmul.f32 %v1237, 0.01
        %v1344 = vmul.f32 %v1324, 0.01
        %v1345 = vmul.f32 %v1326, 0.01
        %v1346 = vmul.f32 %v1241, 0.01
        %v1347 = vmul.f32 %v1243, 0.01
        %v1348 = vmul.f32 %v1330, 0.01
        %v1349 = vmul.f32 %v1332, 0.01
        %v1350 = vmax.f32 %v1223, %v1334
        %v1351 = vmax.f32 %v1225, %v1335
        %v1352 = vmax.f32 %v1312, %v1336
        %v1353 = vmax.f32 %v1314, %v1337
        %v1354 = vmax.f32 %v1229, %v1338
        %v1355 = vmax.f32 %v1231, %v1339
        %v1356 = vmax.f32 %v1318, %v1340
        %v1357 = vmax.f32 %v1320, %v1341
        %v1358 = vmax.f32 %v1235, %v1342
        %v1359 = vmax.f32 %v1237, %v1343
        %v1360 = vmax.f32 %v1324, %v1344
        %v1361 = vmax.f32 %v1326, %v1345
        %v1362 = vmax.f32 %v1241, %v1346
        %v1363 = vmax.f32 %v1243, %v1347
        %v1364 = vmax.f32 %v1330, %v1348
        %v1365 = vmax.f32 %v1332, %v1349
        %v1366 = vld [vmem:[%s3] sm:$0x7]
        %v1367 = vld [vmem:[%s5] sm:$0x7]
        %1369 = vset.pattern.permute.xlu0 0
        %1370 = vperm.xlu0 %1369, %v1367
        %v1371 = vpop.permute.xlu0 %1370
        %v1374 = vsel %vm627, %v1366, 0
        %1376 = vmatprep.subr.mxu0 %v1351
        %1377 = vmatpush1.msra.mxu0 %v1350
        %1378 = vmatprep.subr.mxu0 %v1355
        %1379 = vmatpush1.msra.mxu0 %v1354
        %1380 = vmatprep.subr.mxu0 %v1359
        %1381 = vmatpush1.msra.mxu0 %v1358
        %1382 = vmatprep.subr.mxu0 %v1363
        %1383 = vmatpush1.msra.mxu0 %v1362
        %1384 = vmatprep.subr.mxu0 0.0
        %1385 = vmatpush1.msra.mxu0 0.0
        %1386 = vmatprep.subr.mxu0 0.0
        %1387 = vmatpush1.msra.mxu0 0.0
        %1388 = vmatprep.subr.mxu0 0.0
        %1389 = vmatpush1.msra.mxu0 0.0
        %1390 = vmatprep.subr.mxu0 0.0
        %1391 = vmatpush1.msra.mxu0 0.0
        %1392 = vmatprep.subr.mxu0 0.0
        %1393 = vmatpush1.msra.mxu0 0.0
        %1394 = vmatprep.subr.mxu0 0.0
        %1395 = vmatpush1.msra.mxu0 0.0
        %1396 = vmatprep.subr.mxu0 0.0
        %1397 = vmatpush1.msra.mxu0 0.0
        %1398 = vmatprep.subr.mxu0 0.0
        %1399 = vmatpush1.msra.mxu0 0.0
        %1400 = vmatprep.subr.mxu0 0.0
        %1401 = vmatpush1.msra.mxu0 0.0
        %1402 = vmatprep.subr.mxu0 0.0
        %1403 = vmatpush1.msra.mxu0 0.0
        %1404 = vmatprep.subr.mxu0 0.0
        %1405 = vmatpush1.msra.mxu0 0.0
        %1406 = vmatprep.subr.mxu0 0.0
        %1407 = vmatpush1.msra.mxu0 0.0
        %1408 = vmatprep.subr.mxu0 0.0
        %1409 = vmatpush1.msra.mxu0 0.0
        %1410 = vmatprep.subr.mxu0 0.0
        %1411 = vmatpush1.msra.mxu0 0.0
        %1412 = vmatprep.subr.mxu0 0.0
        %1413 = vmatpush1.msra.mxu0 0.0
        %1414 = vmatprep.subr.mxu0 0.0
        %1415 = vmatpush1.msra.mxu0 0.0
        %1416 = vmatprep.subr.mxu0 0.0
        %1417 = vmatpush1.msra.mxu0 0.0
        %1418 = vmatprep.subr.mxu0 0.0
        %1419 = vmatpush1.msra.mxu0 0.0
        %1420 = vmatprep.subr.mxu0 0.0
        %1421 = vmatpush1.msra.mxu0 0.0
        %1422 = vmatprep.subr.mxu0 0.0
        %1423 = vmatpush1.msra.mxu0 0.0
        %1424 = vmatprep.subr.mxu0 0.0
        %1425 = vmatpush1.msra.mxu0 0.0
        %1426 = vmatprep.subr.mxu0 0.0
        %1427 = vmatpush1.msra.mxu0 0.0
        %1428 = vmatprep.subr.mxu0 0.0
        %1429 = vmatpush1.msra.mxu0 0.0
        %1430 = vmatprep.subr.mxu0 0.0
        %1431 = vmatpush1.msra.mxu0 0.0
        %1432 = vmatprep.subr.mxu0 0.0
        %1433 = vmatpush1.msra.mxu0 0.0
        %1434 = vmatprep.subr.mxu0 0.0
        %1435 = vmatpush1.msra.mxu0 0.0
        %1436 = vmatprep.subr.mxu0 0.0
        %1437 = vmatpush1.msra.mxu0 0.0
        %1438 = vmatprep.subr.mxu0 0.0
        %1439 = vmatpush1.msra.mxu0 0.0
        %1440 = vmatprep.mubr.f32.mxu0 0.0
        %1441 = vmatmul.mubr.f32.gmra.mrb[0].mxu0 %v1374
        %v1442 = vpop.f32.mrb[0].mxu0
        %v1443 = vadd.f32 %v1371, %v1442
        %v1444 = vpop.f32.mrb[0].mxu0
        %v1445 = vadd.f32 %v1371, %v1444
        %1446 = vdwg.mxu0
        %1447 = vmatprep.subr.mxu0 %v1353
        %1448 = vmatpush1.msra.mxu0 %v1352
        %1449 = vmatprep.subr.mxu0 %v1357
        %1450 = vmatpush1.msra.mxu0 %v1356
        %1451 = vmatprep.subr.mxu0 %v1361
        %1452 = vmatpush1.msra.mxu0 %v1360
        %1453 = vmatprep.subr.mxu0 %v1365
        %1454 = vmatpush1.msra.mxu0 %v1364
        %1455 = vmatprep.subr.mxu0 0.0
        %1456 = vmatpush1.msra.mxu0 0.0
        %1457 = vmatprep.subr.mxu0 0.0
        %1458 = vmatpush1.msra.mxu0 0.0
        %1459 = vmatprep.subr.mxu0 0.0
        %1460 = vmatpush1.msra.mxu0 0.0
        %1461 = vmatprep.subr.mxu0 0.0
        %1462 = vmatpush1.msra.mxu0 0.0
        %1463 = vmatprep.subr.mxu0 0.0
        %1464 = vmatpush1.msra.mxu0 0.0
        %1465 = vmatprep.subr.mxu0 0.0
        %1466 = vmatpush1.msra.mxu0 0.0
        %1467 = vmatprep.subr.mxu0 0.0
        %1468 = vmatpush1.msra.mxu0 0.0
        %1469 = vmatprep.subr.mxu0 0.0
        %1470 = vmatpush1.msra.mxu0 0.0
        %1471 = vmatprep.subr.mxu0 0.0
        %1472 = vmatpush1.msra.mxu0 0.0
        %1473 = vmatprep.subr.mxu0 0.0
        %1474 = vmatpush1.msra.mxu0 0.0
        %1475 = vmatprep.subr.mxu0 0.0
        %1476 = vmatpush1.msra.mxu0 0.0
        %1477 = vmatprep.subr.mxu0 0.0
        %1478 = vmatpush1.msra.mxu0 0.0
        %1479 = vmatprep.subr.mxu0 0.0
        %1480 = vmatpush1.msra.mxu0 0.0
        %1481 = vmatprep.subr.mxu0 0.0
        %1482 = vmatpush1.msra.mxu0 0.0
        %1483 = vmatprep.subr.mxu0 0.0
        %1484 = vmatpush1.msra.mxu0 0.0
        %1485 = vmatprep.subr.mxu0 0.0
        %1486 = vmatpush1.msra.mxu0 0.0
        %1487 = vmatprep.subr.mxu0 0.0
        %1488 = vmatpush1.msra.mxu0 0.0
        %1489 = vmatprep.subr.mxu0 0.0
        %1490 = vmatpush1.msra.mxu0 0.0
        %1491 = vmatprep.subr.mxu0 0.0
        %1492 = vmatpush1.msra.mxu0 0.0
        %1493 = vmatprep.subr.mxu0 0.0
        %1494 = vmatpush1.msra.mxu0 0.0
        %1495 = vmatprep.subr.mxu0 0.0
        %1496 = vmatpush1.msra.mxu0 0.0
        %1497 = vmatprep.subr.mxu0 0.0
        %1498 = vmatpush1.msra.mxu0 0.0
        %1499 = vmatprep.subr.mxu0 0.0
        %1500 = vmatpush1.msra.mxu0 0.0
        %1501 = vmatprep.subr.mxu0 0.0
        %1502 = vmatpush1.msra.mxu0 0.0
        %1503 = vmatprep.subr.mxu0 0.0
        %1504 = vmatpush1.msra.mxu0 0.0
        %1505 = vmatprep.subr.mxu0 0.0
        %1506 = vmatpush1.msra.mxu0 0.0
        %1507 = vmatprep.subr.mxu0 0.0
        %1508 = vmatpush1.msra.mxu0 0.0
        %1509 = vmatprep.subr.mxu0 0.0
        %1510 = vmatpush1.msra.mxu0 0.0
        %1511 = vmatprep.mubr.f32.mxu0 0.0
        %1512 = vmatmul.mubr.f32.gmra.mrb[0].mxu0 %v1374
        %v1513 = vpop.f32.mrb[0].mxu0
        %v1514 = vadd.f32 %v1371, %v1513
        %v1515 = vpop.f32.mrb[0].mxu0
        %v1516 = vadd.f32 %v1371, %v1515
        %1517 = vdwg.mxu0
        %v1522 = vcombine.low %v1443, %v1445
        %v1523 = vcombine.low %v1514, %v1516
        %1526 = vst [vmem:[%s245] sm:$0x77] %v1522
        %1527 = vst [vmem:[%s245 + $0x8] sm:$0x77] %v1523
        %s1528 = sand.u32 %s159, 1
        %s1529 = scalar_lea.sflag [#allocation3], %s1528
        %s1530 = sand.u32 %s159, 1
        %s1531 = smul.addr %s1530, 16
        %s1532 = scalar_lea.vmem [#allocation2], %s1531
        // Predicated region
        $region45: #{tpu_custom_call.1} parent=43 // pred_check
          %p1533 = pneg %p169
        $region46: #{tpu_custom_call.1} parent=43 // pred_check_branch
          %1535 = sbr.rel (%p1533) target = $region48
        $region47: #{tpu_custom_call.1} parent=43 // pred_region
          %s1536 = smul.u32 4, %s20
          %s1538 = ssub.s32 256, 256
          %1539 = vsyncadd %s1529, %s1538
          %s1540 = smul.addr %s1536, 64
          %s1541 = scalar_lea.hbm %s6, %s1540
          %s1543 = sshll.u32 %s1532, 4
          %s1544 = int_to_ptr.vmem [resolvable:$true] %s1543
          %1546 = dma.vmem_to_hbm [thread:$0]  %s1544, 256, %s1541, %s1529
        $region48: #{tpu_custom_call.1} parent=43 // pred_fallthru
          _
      $region44: #{tpu_custom_call.1} parent=5 // pred_fallthru
        _
      %p1547 = scmp.le.s32.totalorder 2, %s15
      // Predicated region
      $region49: #{tpu_custom_call.1} parent=5 // pred_check
        %p1548 = pneg %p1547
      $region50: #{tpu_custom_call.1} parent=5 // pred_check_branch
        %1550 = sbr.rel (%p1548) target = $region52
      $region51: #{tpu_custom_call.1} parent=5 // pred_region
        %s1551 = ssub.s32 %s15, 2
        // Predicated region
        $region53: #{tpu_custom_call.1} parent=51 // pred_check
          %p1552 = pneg %p175
        $region54: #{tpu_custom_call.1} parent=51 // pred_check_branch
          %1554 = sbr.rel (%p1552) target = $region56
        $region55: #{tpu_custom_call.1} parent=51 // pred_region
          %s1555 = sand.u32 %s160, 1
          %s1556 = scalar_lea.sflag [#allocation3], %s1555
          %s1557 = sand.u32 %s160, 1
          %s1558 = smul.addr %s1557, 16
          %s1559 = scalar_lea.vmem [#allocation2], %s1558
          %1560 = dma.done %s1556, 256
        $region56: #{tpu_custom_call.1} parent=51 // pred_fallthru
          _
      $region52: #{tpu_custom_call.1} parent=5 // pred_fallthru
        _
    $region6: #{tpu_custom_call.1} parent=1 // loop_footer
      %s19 = sadd.s32 1, %s15
    $region7: #{tpu_custom_call.1} parent=1 // loop_footer_branch
      %14 = sbr.rel target = $region3
    $region8: #{tpu_custom_call.1} parent=1 // loop_exit
      _
    %1561 = vsyncpa [#allocation3], 1
    %s1562 = scalar_lea.sflag [#allocation3], 1
    %1563 = vsyncpa %s1562, 1

</llo_original>
